<compile_context>
chip_gen: v5e
topology: v5e:2x2
jax: 0.10.0
libtpu: 0.0.40
codegen_flags: <defaults>
</compile_context>

<pallas_src>
import jax
import jax.numpy as jnp
import numpy as np
from jax import lax
from jax.experimental import pallas as pl
from jax.experimental.pallas import tpu as pltpu

M = 16          # LoRaCNN hyper-parameter; input is (B, 1, M, M)
EPS = 1e-5      # PyTorch BatchNorm default eps


# ------------------------------- fused kernel -------------------------------

def lora_fused_kernel(x_ref, rw1_ref, rw2_ref, pc1_ref, pc2_ref,
                      g1_ref, g2_ref, bn1_ref, bn2_ref,
                      fc1w_ref, fv1_ref, fc2w_ref, fv2_ref,
                      fc3w_ref, fc3b_ref,
                      out_ref, xpad1, xpad2, flat_ref):
    f32 = jnp.float32
    bf16 = jnp.bfloat16
    B = x_ref.shape[0]

    # ---- stage 0: H-padded input (W padding is folded into the banded
    # ---- conv-weight matrices, so no lane shifts are ever needed) ----------
    xpad1[...] = jnp.zeros_like(xpad1)
    x = x_ref[...]                                   # (B, 1, 16, 16)
    xpad1[:, 2:18, :] = x[:, 0, :, :]

    def bn_relu(acc, g_ref, bn_ref, n_lanes):
        # Fused per-channel BN statistics: one pass for sum & sum-of-squares,
        # one tiny channel-block matmul to broadcast them back to every lane.
        s = jnp.sum(jnp.sum(acc, axis=0), axis=0, keepdims=True)        # (1, L)
        q = jnp.sum(jnp.sum(acc * acc, axis=0), axis=0, keepdims=True)  # (1, L)
        mean = jnp.dot(s, g_ref[...], preferred_element_type=f32)       # E[x]
        ex2 = jnp.dot(q, g_ref[...], preferred_element_type=f32)        # E[x^2]
        var = ex2 - mean * mean
        scale = bn_ref[0:1, :] * lax.rsqrt(var + EPS)
        shift = bn_ref[1:2, :] - mean * scale
        return jnp.maximum(acc * scale + shift, 0.0)

    # ---- stage 1: conv1 (1->4, k=4, pad=2) as 4 banded MXU matmuls ---------
    # acc1[b, h, co*17 + w] = conv1 output; single lane-stacked accumulator.
    acc1 = jnp.einsum('bhw,bwn->bhn', xpad1[:, 0:17, :], rw1_ref[0],
                      preferred_element_type=f32)
    for kh in range(1, 4):
        acc1 = acc1 + jnp.einsum('bhw,bwn->bhn', xpad1[:, kh:kh + 17, :],
                                 rw1_ref[kh], preferred_element_type=f32)

    y1 = bn_relu(acc1, g1_ref, bn1_ref, 68)                 # (B, 17, 68)

    # ---- pool 1: W direction on the MXU, H direction as row-pair adds ------
    t1 = jnp.einsum('bhc,bcv->bhv', y1, pc1_ref[...],
                    preferred_element_type=f32)             # (B, 17, 32)
    xpad2[...] = jnp.zeros_like(xpad2)                      # H-padded conv2 input
    for hp in range(8):
        xpad2[:, 2 + hp, :] = t1[:, 2 * hp, :] + t1[:, 2 * hp + 1, :]

    # ---- stage 2: conv2 (4->8, k=4, pad=2) as 4 banded MXU matmuls ---------
    # acc2[b, h, co*9 + w]
    acc2 = jnp.einsum('bhv,bvn->bhn', xpad2[:, 0:9, :], rw2_ref[0],
                      preferred_element_type=f32)
    for kh in range(1, 4):
        acc2 = acc2 + jnp.einsum('bhv,bvn->bhn', xpad2[:, kh:kh + 9, :],
                                 rw2_ref[kh], preferred_element_type=f32)

    y2 = bn_relu(acc2, g2_ref, bn2_ref, 72)                 # (B, 9, 72)

    # ---- pool 2 + flatten: lane-dense (B, 128) rows ------------------------
    t2 = jnp.einsum('bhc,bcv->bhv', y2, pc2_ref[...],
                    preferred_element_type=f32)             # (B, 9, 32)
    for hp in range(4):
        flat_ref[:, hp * 32:(hp + 1) * 32] = t2[:, 2 * hp, :] + t2[:, 2 * hp + 1, :]

    # ---- FC head: fc1/BN3/ReLU -> fc2/BN4/ReLU -> fc3 (bf16 MXU dots) ------
    def fc_bn_relu(h_in, w_ref, v_ref):
        h = jnp.dot(h_in.astype(bf16), w_ref[...], preferred_element_type=f32)
        inv_n = 1.0 / h.shape[0]
        mu = jnp.sum(h, axis=0, keepdims=True) * inv_n
        ex2 = jnp.sum(h * h, axis=0, keepdims=True) * inv_n
        var = ex2 - mu * mu
        return jnp.maximum(v_ref[0:1, :] * (h - mu) * lax.rsqrt(var + EPS)
                           + v_ref[1:2, :], 0.0)

    flat = flat_ref[...]                                    # (B, 128)
    h1 = fc_bn_relu(flat, fc1w_ref, fv1_ref)                # (B, 64)
    h2 = fc_bn_relu(h1, fc2w_ref, fv2_ref)                  # (B, 32)
    out_ref[...] = jnp.dot(h2.astype(bf16), fc3w_ref[...],
                           preferred_element_type=f32) + fc3b_ref[...]


# --------------------------------- wrapper ----------------------------------

def lora_cnn_forward(x_nchw, params):
    """Parameter-only prep (banded conv matrices, pooling / BN-broadcast
    matrices, permuted FC weights) + one fused pallas_call."""
    B = x_nchw.shape[0]
    f32, bf16 = jnp.float32, jnp.bfloat16

    # Banded conv-weight matrices: RW[kh][w_in, co*W_out + w_out] =
    #   W_conv[co, ci, kh, w_in - w_out + pad]  (0 outside the kernel window),
    # so conv = sum_kh  slab(kh) @ RW[kh]  with implicit W padding.
    kw = np.arange(4).reshape(1, 1, 4)
    sel1 = (np.arange(16).reshape(16, 1, 1) - np.arange(17).reshape(1, 17, 1) + 2
            == kw).astype(np.float32)                       # (16, 17, 4)
    sel2 = (np.arange(8).reshape(8, 1, 1) - np.arange(9).reshape(1, 9, 1) + 2
            == kw).astype(np.float32)                       # (8, 9, 4)

    a1 = params["conv1_w"][:, 0]                            # (4, 4, 4) [co, kh, kw]
    rw1 = jnp.einsum('ckq,wvq->kwcv', a1, jnp.asarray(sel1)).reshape(4, 16, 68)
    rw1 = jnp.broadcast_to(rw1[:, None], (4, B, 16, 68)).astype(f32)

    rw2 = jnp.einsum('cikq,wvq->kiwcv', params["conv2_w"],
                     jnp.asarray(sel2)).reshape(4, 32, 72)
    rw2 = jnp.broadcast_to(rw2[:, None], (4, B, 32, 72)).astype(f32)

    # Block-diagonal column (W) pooling matrices, 0.25 factor included.
    def colpool_mat(n_ch, src_w, dst_w):
        i = np.arange(n_ch * src_w)
        j = np.arange(n_ch * dst_w)
        same_ch = (i[:, None] // src_w) == (j[None, :] // dst_w)
        same_col = ((i[:, None] % src_w) // 2) == (j[None, :] % dst_w)
        return (same_ch & same_col).astype(np.float32) * 0.25

    pc1 = jnp.broadcast_to(jnp.asarray(colpool_mat(4, 17, 8))[None], (B, 68, 32))
    pc2 = jnp.broadcast_to(jnp.asarray(colpool_mat(8, 9, 4))[None], (B, 72, 32))

    # Channel-block broadcast matrices for the fused BN statistics.
    def bn_bcast_mat(n_ch, wsz, count):
        i = np.arange(n_ch * wsz)
        return (((i[:, None] // wsz) == (i[None, :] // wsz))
                .astype(np.float32) / float(count))

    g1 = jnp.asarray(bn_bcast_mat(4, 17, B * 17 * 17))       # (68, 68)
    g2 = jnp.asarray(bn_bcast_mat(8, 9, B * 9 * 9))          # (72, 72)

    bn1v = jnp.stack([jnp.repeat(params["bn1_g"], 17),
                      jnp.repeat(params["bn1_b"], 17)])      # (2, 68)
    bn2v = jnp.stack([jnp.repeat(params["bn2_g"], 9),
                      jnp.repeat(params["bn2_b"], 9)])       # (2, 72)

    # fc1 weights permuted so the kernel's (hp, co, wp) flatten order matches
    # torch's CHW flatten; conv1/conv2/fc1/fc2 biases dropped (they cancel
    # exactly under the training-mode BatchNorm that follows each of them).
    lane = np.arange(128)
    perm = ((lane % 32) // 4) * 16 + (lane // 32) * 4 + (lane % 4)
    fc1w = params["fc1_w"][:, perm].T.astype(bf16)           # (128, 64)
    fc2w = params["fc2_w"].T.astype(bf16)                    # (64, 32)
    fc3w = params["fc3_w"].T.astype(bf16)                    # (32, 128)
    fv1 = jnp.stack([params["bn3_g"], params["bn3_b"]])      # (2, 64)
    fv2 = jnp.stack([params["bn4_g"], params["bn4_b"]])      # (2, 32)
    fc3b = params["fc3_b"].reshape(1, 128)

    vmem = pl.BlockSpec(memory_space=pltpu.MemorySpace.VMEM)

    return pl.pallas_call(
        lora_fused_kernel,
        out_shape=jax.ShapeDtypeStruct((B, 128), f32),
        in_specs=[vmem] * 15,
        out_specs=vmem,
        scratch_shapes=[
            pltpu.VMEM((B, 20, 16), f32),    # H-padded conv1 input
            pltpu.VMEM((B, 12, 32), f32),    # H-padded conv2 input (lane-stacked)
            pltpu.VMEM((B, 128), f32),       # flattened pooled features
        ],
    )(x_nchw, rw1, rw2, pc1, pc2, g1, g2, bn1v, bn2v,
      fc1w, fv1, fc2w, fv2, fc3w, fc3b)


# --------------------------- params / reference -----------------------------

def init_params(key, m):
    ks = jax.random.split(key, 10)

    def w(k, shape, fan_in):
        bound = 1.0 / float(np.sqrt(fan_in))
        return jax.random.uniform(k, shape, jnp.float32, -bound, bound)

    flat_in = (m // 2) * (m // 4) * (m // 4)
    return {
        "conv1_w": w(ks[0], (m // 4, 1, 4, 4), 1 * 16),
        "conv1_b": w(ks[1], (m // 4,), 1 * 16),
        "conv2_w": w(ks[2], (m // 2, m // 4, 4, 4), (m // 4) * 16),
        "conv2_b": w(ks[3], (m // 2,), (m // 4) * 16),
        "fc1_w": w(ks[4], (4 * m, flat_in), flat_in),
        "fc1_b": w(ks[5], (4 * m,), flat_in),
        "fc2_w": w(ks[6], (2 * m, 4 * m), 4 * m),
        "fc2_b": w(ks[7], (2 * m,), 4 * m),
        "fc3_w": w(ks[8], (128, 2 * m), 2 * m),
        "fc3_b": w(ks[9], (128,), 2 * m),
        "bn1_g": jnp.ones((m // 4,), jnp.float32), "bn1_b": jnp.zeros((m // 4,), jnp.float32),
        "bn2_g": jnp.ones((m // 2,), jnp.float32), "bn2_b": jnp.zeros((m // 2,), jnp.float32),
        "bn3_g": jnp.ones((4 * m,), jnp.float32), "bn3_b": jnp.zeros((4 * m,), jnp.float32),
        "bn4_g": jnp.ones((2 * m,), jnp.float32), "bn4_b": jnp.zeros((2 * m,), jnp.float32),
    }


def reference_forward(x_nchw, params):
    # Pure-JAX reference mirroring the PyTorch forward (training-mode BN).
    def conv2d(x, w, b, pad):
        y = jax.lax.conv_general_dilated(
            x, w, (1, 1), [(pad, pad), (pad, pad)],
            dimension_numbers=("NCHW", "OIHW", "NCHW"))
        return y + b[None, :, None, None]

    def bn(x, g, be, axes):
        m = jnp.mean(x, axis=axes, keepdims=True)
        v = jnp.mean((x - m) ** 2, axis=axes, keepdims=True)
        sh = [1] * x.ndim
        sh[1] = -1
        return g.reshape(sh) * (x - m) * jax.lax.rsqrt(v + EPS) + be.reshape(sh)

    def pool(x):
        return jax.lax.reduce_window(x, 0.0, jax.lax.add,
                                     (1, 1, 2, 2), (1, 1, 2, 2), "VALID") / 4.0

    x = jax.nn.relu(bn(conv2d(x_nchw, params["conv1_w"], params["conv1_b"], 2),
                       params["bn1_g"], params["bn1_b"], (0, 2, 3)))
    x = pool(x)
    x = jax.nn.relu(bn(conv2d(x, params["conv2_w"], params["conv2_b"], 2),
                       params["bn2_g"], params["bn2_b"], (0, 2, 3)))
    x = pool(x)
    x = x.reshape(x.shape[0], -1)
    x = jax.nn.relu(bn(x @ params["fc1_w"].T + params["fc1_b"],
                       params["bn3_g"], params["bn3_b"], (0,)))
    x = jax.nn.relu(bn(x @ params["fc2_w"].T + params["fc2_b"],
                       params["bn4_g"], params["bn4_b"], (0,)))
    return x @ params["fc3_w"].T + params["fc3_b"]


if __name__ == "__main__":
    key = jax.random.PRNGKey(0)
    kx, kp = jax.random.split(key)
    B = 4                                                 # small batch (>1 for BN)
    x = jax.random.normal(kx, (B, 1, M, M), jnp.float32)  # PyTorch NCHW input
    params = init_params(kp, M)

    out = jax.jit(lora_cnn_forward)(x, params)
    out = jax.block_until_ready(out)

    ref = reference_forward(x, params)
    assert out.shape == (B, 128)
    np.testing.assert_allclose(np.asarray(out), np.asarray(ref), rtol=5e-2, atol=5e-2)
    print("KERNEL_OK")
</pallas_src>

<mosaic_0001>
module attributes {stable_mosaic.version = 11 : i64} {
  func.func @lora_fused_kernel(%arg0: memref<4x1x16x16xf32, #tpu.memory_space<vmem>>, %arg1: memref<4x4x16x68xf32, #tpu.memory_space<vmem>>, %arg2: memref<4x4x32x72xf32, #tpu.memory_space<vmem>>, %arg3: memref<4x68x32xf32, #tpu.memory_space<vmem>>, %arg4: memref<4x72x32xf32, #tpu.memory_space<vmem>>, %arg5: memref<68x68xf32, #tpu.memory_space<vmem>>, %arg6: memref<72x72xf32, #tpu.memory_space<vmem>>, %arg7: memref<2x68xf32, #tpu.memory_space<vmem>>, %arg8: memref<2x72xf32, #tpu.memory_space<vmem>>, %arg9: memref<128x64xbf16, #tpu.memory_space<vmem>>, %arg10: memref<2x64xf32, #tpu.memory_space<vmem>>, %arg11: memref<64x32xbf16, #tpu.memory_space<vmem>>, %arg12: memref<2x32xf32, #tpu.memory_space<vmem>>, %arg13: memref<32x128xbf16, #tpu.memory_space<vmem>>, %arg14: memref<1x128xf32, #tpu.memory_space<vmem>>, %arg15: memref<4x128xf32, #tpu.memory_space<vmem>>, %arg16: memref<4x20x16xf32, #tpu.memory_space<vmem>>, %arg17: memref<4x12x32xf32, #tpu.memory_space<vmem>>, %arg18: memref<4x128xf32, #tpu.memory_space<vmem>>) attributes {dimension_semantics = [], scalar_prefetch = 0 : i64, scratch_operands = 3 : i64, tpu.core_type = #tpu.core_type<tc>} {
    %cst = arith.constant 0.000000e+00 : f32
    %0 = vector.broadcast %cst : f32 to vector<4x20x16xf32>
    %c0 = arith.constant 0 : index
    %c0_0 = arith.constant 0 : index
    %c0_1 = arith.constant 0 : index
    %1 = vector.load %arg16[%c0, %c0_0, %c0_1] : memref<4x20x16xf32, #tpu.memory_space<vmem>>, vector<4x20x16xf32>
    tpu.vector_store %arg16[%c0, %c0_0, %c0_1], %0 {strides = array<i32>} : memref<4x20x16xf32, #tpu.memory_space<vmem>>, vector<4x20x16xf32>,
    %c0_2 = arith.constant 0 : index
    %c0_3 = arith.constant 0 : index
    %c0_4 = arith.constant 0 : index
    %c0_5 = arith.constant 0 : index
    %2 = vector.load %arg0[%c0_2, %c0_3, %c0_4, %c0_5] : memref<4x1x16x16xf32, #tpu.memory_space<vmem>>, vector<4x1x16x16xf32>
    %3 = vector.shape_cast %2 : vector<4x1x16x16xf32> to vector<4x16x16xf32>
    %c0_6 = arith.constant 0 : index
    %c2 = arith.constant 2 : index
    %c0_7 = arith.constant 0 : index
    %4 = vector.load %arg16[%c0_6, %c2, %c0_7] : memref<4x20x16xf32, #tpu.memory_space<vmem>>, vector<4x16x16xf32>
    tpu.vector_store %arg16[%c0_6, %c2, %c0_7], %3 {strides = array<i32>} : memref<4x20x16xf32, #tpu.memory_space<vmem>>, vector<4x16x16xf32>,
    %c0_8 = arith.constant 0 : index
    %c0_9 = arith.constant 0 : index
    %c0_10 = arith.constant 0 : index
    %5 = vector.load %arg16[%c0_8, %c0_9, %c0_10] : memref<4x20x16xf32, #tpu.memory_space<vmem>>, vector<4x17x16xf32>
    %c0_11 = arith.constant 0 : index
    %c0_12 = arith.constant 0 : index
    %c0_13 = arith.constant 0 : index
    %c0_14 = arith.constant 0 : index
    %6 = vector.load %arg1[%c0_11, %c0_12, %c0_13, %c0_14] : memref<4x4x16x68xf32, #tpu.memory_space<vmem>>, vector<1x4x16x68xf32>
    %7 = vector.shape_cast %6 : vector<1x4x16x68xf32> to vector<4x16x68xf32>
    "tpu.trace_start"() <{level = 10 : i32, message = "bhw,bwn->bhn"}> : () -> ()
    %cst_15 = arith.constant dense<0.000000e+00> : vector<4x17x68xf32>
    %8 = tpu.matmul %5, %7, %cst_15 {dimension_numbers = #tpu.dot_dimension_numbers<[2], [1], [1], [2], [0, 0, 0, 1, 1, 2], [0], [0]>} : vector<4x17x16xf32>, vector<4x16x68xf32>, vector<4x17x68xf32> -> vector<4x17x68xf32>
    "tpu.trace_stop"() : () -> ()
    %c0_16 = arith.constant 0 : index
    %c1 = arith.constant 1 : index
    %c0_17 = arith.constant 0 : index
    %9 = vector.load %arg16[%c0_16, %c1, %c0_17] : memref<4x20x16xf32, #tpu.memory_space<vmem>>, vector<4x17x16xf32>
    %c1_18 = arith.constant 1 : index
    %c0_19 = arith.constant 0 : index
    %c0_20 = arith.constant 0 : index
    %c0_21 = arith.constant 0 : index
    %10 = vector.load %arg1[%c1_18, %c0_19, %c0_20, %c0_21] : memref<4x4x16x68xf32, #tpu.memory_space<vmem>>, vector<1x4x16x68xf32>
    %11 = vector.shape_cast %10 : vector<1x4x16x68xf32> to vector<4x16x68xf32>
    "tpu.trace_start"() <{level = 10 : i32, message = "bhw,bwn->bhn"}> : () -> ()
    %cst_22 = arith.constant dense<0.000000e+00> : vector<4x17x68xf32>
    %12 = tpu.matmul %9, %11, %cst_22 {dimension_numbers = #tpu.dot_dimension_numbers<[2], [1], [1], [2], [0, 0, 0, 1, 1, 2], [0], [0]>} : vector<4x17x16xf32>, vector<4x16x68xf32>, vector<4x17x68xf32> -> vector<4x17x68xf32>
    "tpu.trace_stop"() : () -> ()
    %13 = arith.addf %8, %12 : vector<4x17x68xf32>
    %c0_23 = arith.constant 0 : index
    %c2_24 = arith.constant 2 : index
    %c0_25 = arith.constant 0 : index
    %14 = vector.load %arg16[%c0_23, %c2_24, %c0_25] : memref<4x20x16xf32, #tpu.memory_space<vmem>>, vector<4x17x16xf32>
    %c2_26 = arith.constant 2 : index
    %c0_27 = arith.constant 0 : index
    %c0_28 = arith.constant 0 : index
    %c0_29 = arith.constant 0 : index
    %15 = vector.load %arg1[%c2_26, %c0_27, %c0_28, %c0_29] : memref<4x4x16x68xf32, #tpu.memory_space<vmem>>, vector<1x4x16x68xf32>
    %16 = vector.shape_cast %15 : vector<1x4x16x68xf32> to vector<4x16x68xf32>
    "tpu.trace_start"() <{level = 10 : i32, message = "bhw,bwn->bhn"}> : () -> ()
    %cst_30 = arith.constant dense<0.000000e+00> : vector<4x17x68xf32>
    %17 = tpu.matmul %14, %16, %cst_30 {dimension_numbers = #tpu.dot_dimension_numbers<[2], [1], [1], [2], [0, 0, 0, 1, 1, 2], [0], [0]>} : vector<4x17x16xf32>, vector<4x16x68xf32>, vector<4x17x68xf32> -> vector<4x17x68xf32>
    "tpu.trace_stop"() : () -> ()
    %18 = arith.addf %13, %17 : vector<4x17x68xf32>
    %c0_31 = arith.constant 0 : index
    %c3 = arith.constant 3 : index
    %c0_32 = arith.constant 0 : index
    %19 = vector.load %arg16[%c0_31, %c3, %c0_32] : memref<4x20x16xf32, #tpu.memory_space<vmem>>, vector<4x17x16xf32>
    %c3_33 = arith.constant 3 : index
    %c0_34 = arith.constant 0 : index
    %c0_35 = arith.constant 0 : index
    %c0_36 = arith.constant 0 : index
    %20 = vector.load %arg1[%c3_33, %c0_34, %c0_35, %c0_36] : memref<4x4x16x68xf32, #tpu.memory_space<vmem>>, vector<1x4x16x68xf32>
    %21 = vector.shape_cast %20 : vector<1x4x16x68xf32> to vector<4x16x68xf32>
    "tpu.trace_start"() <{level = 10 : i32, message = "bhw,bwn->bhn"}> : () -> ()
    %cst_37 = arith.constant dense<0.000000e+00> : vector<4x17x68xf32>
    %22 = tpu.matmul %19, %21, %cst_37 {dimension_numbers = #tpu.dot_dimension_numbers<[2], [1], [1], [2], [0, 0, 0, 1, 1, 2], [0], [0]>} : vector<4x17x16xf32>, vector<4x16x68xf32>, vector<4x17x68xf32> -> vector<4x17x68xf32>
    "tpu.trace_stop"() : () -> ()
    %23 = arith.addf %18, %22 : vector<4x17x68xf32>
    %cst_38 = arith.constant dense<0.000000e+00> : vector<17x68xf32>
    %24 = vector.multi_reduction <add>, %23, %cst_38 [0] : vector<4x17x68xf32> to vector<17x68xf32>
    %cst_39 = arith.constant dense<0.000000e+00> : vector<68xf32>
    %25 = vector.multi_reduction <add>, %24, %cst_39 [0] : vector<17x68xf32> to vector<68xf32>
    %26 = vector.shape_cast %25 : vector<68xf32> to vector<1x68xf32>
    %27 = arith.mulf %23, %23 : vector<4x17x68xf32>
    %cst_40 = arith.constant dense<0.000000e+00> : vector<17x68xf32>
    %28 = vector.multi_reduction <add>, %27, %cst_40 [0] : vector<4x17x68xf32> to vector<17x68xf32>
    %cst_41 = arith.constant dense<0.000000e+00> : vector<68xf32>
    %29 = vector.multi_reduction <add>, %28, %cst_41 [0] : vector<17x68xf32> to vector<68xf32>
    %30 = vector.shape_cast %29 : vector<68xf32> to vector<1x68xf32>
    %c0_42 = arith.constant 0 : index
    %c0_43 = arith.constant 0 : index
    %31 = vector.load %arg5[%c0_42, %c0_43] : memref<68x68xf32, #tpu.memory_space<vmem>>, vector<68x68xf32>
    %cst_44 = arith.constant dense<0.000000e+00> : vector<1x68xf32>
    %32 = tpu.matmul %26, %31, %cst_44 {dimension_numbers = #tpu.dot_dimension_numbers<[1], [0], [0], [1], [0, 0, 1, 1], [], []>} : vector<1x68xf32>, vector<68x68xf32>, vector<1x68xf32> -> vector<1x68xf32>
    %c0_45 = arith.constant 0 : index
    %c0_46 = arith.constant 0 : index
    %33 = vector.load %arg5[%c0_45, %c0_46] : memref<68x68xf32, #tpu.memory_space<vmem>>, vector<68x68xf32>
    %cst_47 = arith.constant dense<0.000000e+00> : vector<1x68xf32>
    %34 = tpu.matmul %30, %33, %cst_47 {dimension_numbers = #tpu.dot_dimension_numbers<[1], [0], [0], [1], [0, 0, 1, 1], [], []>} : vector<1x68xf32>, vector<68x68xf32>, vector<1x68xf32> -> vector<1x68xf32>
    %35 = arith.mulf %32, %32 : vector<1x68xf32>
    %36 = arith.subf %34, %35 : vector<1x68xf32>
    %c0_48 = arith.constant 0 : index
    %c0_49 = arith.constant 0 : index
    %37 = vector.load %arg7[%c0_48, %c0_49] : memref<2x68xf32, #tpu.memory_space<vmem>>, vector<1x68xf32>
    %cst_50 = arith.constant 9.99999974E-6 : f32
    %38 = vector.broadcast %cst_50 : f32 to vector<1x68xf32>
    %39 = arith.addf %36, %38 : vector<1x68xf32>
    %40 = math.rsqrt %39 : vector<1x68xf32>
    %41 = arith.mulf %37, %40 : vector<1x68xf32>
    %c1_51 = arith.constant 1 : index
    %c0_52 = arith.constant 0 : index
    %42 = vector.load %arg7[%c1_51, %c0_52] : memref<2x68xf32, #tpu.memory_space<vmem>>, vector<1x68xf32>
    %43 = arith.mulf %32, %41 : vector<1x68xf32>
    %44 = arith.subf %42, %43 : vector<1x68xf32>
    %45 = vector.shape_cast %41 : vector<1x68xf32> to vector<1x1x68xf32>
    %46 = vector.broadcast %45 : vector<1x1x68xf32> to vector<4x17x68xf32>
    %47 = arith.mulf %23, %46 : vector<4x17x68xf32>
    %48 = vector.shape_cast %44 : vector<1x68xf32> to vector<1x1x68xf32>
    %49 = vector.broadcast %48 : vector<1x1x68xf32> to vector<4x17x68xf32>
    %50 = arith.addf %47, %49 : vector<4x17x68xf32>
    %cst_53 = arith.constant 0.000000e+00 : f32
    %51 = vector.broadcast %cst_53 : f32 to vector<4x17x68xf32>
    %52 = arith.maximumf %50, %51 : vector<4x17x68xf32>
    %c0_54 = arith.constant 0 : index
    %c0_55 = arith.constant 0 : index
    %c0_56 = arith.constant 0 : index
    %53 = vector.load %arg3[%c0_54, %c0_55, %c0_56] : memref<4x68x32xf32, #tpu.memory_space<vmem>>, vector<4x68x32xf32>
    "tpu.trace_start"() <{level = 10 : i32, message = "bhc,bcv->bhv"}> : () -> ()
    %cst_57 = arith.constant dense<0.000000e+00> : vector<4x17x32xf32>
    %54 = tpu.matmul %52, %53, %cst_57 {dimension_numbers = #tpu.dot_dimension_numbers<[2], [1], [1], [2], [0, 0, 0, 1, 1, 2], [0], [0]>} : vector<4x17x68xf32>, vector<4x68x32xf32>, vector<4x17x32xf32> -> vector<4x17x32xf32>
    %cst_58 = arith.constant 0.000000e+00 : f32
    "tpu.trace_stop"() : () -> ()
    %55 = vector.broadcast %cst_58 : f32 to vector<4x12x32xf32>
    %c0_59 = arith.constant 0 : index
    %c0_60 = arith.constant 0 : index
    %c0_61 = arith.constant 0 : index
    %56 = vector.load %arg17[%c0_59, %c0_60, %c0_61] : memref<4x12x32xf32, #tpu.memory_space<vmem>>, vector<4x12x32xf32>
    tpu.vector_store %arg17[%c0_59, %c0_60, %c0_61], %55 {strides = array<i32>} : memref<4x12x32xf32, #tpu.memory_space<vmem>>, vector<4x12x32xf32>,
    %57 = vector.extract_strided_slice %54 {offsets = [0, 0, 0], sizes = [4, 1, 32], strides = [1, 1, 1]} : vector<4x17x32xf32> to vector<4x1x32xf32>
    %58 = vector.shape_cast %57 : vector<4x1x32xf32> to vector<4x32xf32>
    %59 = vector.extract_strided_slice %54 {offsets = [0, 1, 0], sizes = [4, 1, 32], strides = [1, 1, 1]} : vector<4x17x32xf32> to vector<4x1x32xf32>
    %60 = vector.shape_cast %59 : vector<4x1x32xf32> to vector<4x32xf32>
    %61 = arith.addf %58, %60 : vector<4x32xf32>
    %c0_62 = arith.constant 0 : index
    %c2_63 = arith.constant 2 : index
    %c0_64 = arith.constant 0 : index
    %62 = vector.load %arg17[%c0_62, %c2_63, %c0_64] : memref<4x12x32xf32, #tpu.memory_space<vmem>>, vector<4x1x32xf32>
    %63 = vector.shape_cast %62 : vector<4x1x32xf32> to vector<4x32xf32>
    %64 = vector.shape_cast %61 : vector<4x32xf32> to vector<4x1x32xf32>
    tpu.vector_store %arg17[%c0_62, %c2_63, %c0_64], %64 {strides = array<i32>} : memref<4x12x32xf32, #tpu.memory_space<vmem>>, vector<4x1x32xf32>,
    %65 = vector.extract_strided_slice %54 {offsets = [0, 2, 0], sizes = [4, 1, 32], strides = [1, 1, 1]} : vector<4x17x32xf32> to vector<4x1x32xf32>
    %66 = vector.shape_cast %65 : vector<4x1x32xf32> to vector<4x32xf32>
    %67 = vector.extract_strided_slice %54 {offsets = [0, 3, 0], sizes = [4, 1, 32], strides = [1, 1, 1]} : vector<4x17x32xf32> to vector<4x1x32xf32>
    %68 = vector.shape_cast %67 : vector<4x1x32xf32> to vector<4x32xf32>
    %69 = arith.addf %66, %68 : vector<4x32xf32>
    %c0_65 = arith.constant 0 : index
    %c3_66 = arith.constant 3 : index
    %c0_67 = arith.constant 0 : index
    %70 = vector.load %arg17[%c0_65, %c3_66, %c0_67] : memref<4x12x32xf32, #tpu.memory_space<vmem>>, vector<4x1x32xf32>
    %71 = vector.shape_cast %70 : vector<4x1x32xf32> to vector<4x32xf32>
    %72 = vector.shape_cast %69 : vector<4x32xf32> to vector<4x1x32xf32>
    tpu.vector_store %arg17[%c0_65, %c3_66, %c0_67], %72 {strides = array<i32>} : memref<4x12x32xf32, #tpu.memory_space<vmem>>, vector<4x1x32xf32>,
    %73 = vector.extract_strided_slice %54 {offsets = [0, 4, 0], sizes = [4, 1, 32], strides = [1, 1, 1]} : vector<4x17x32xf32> to vector<4x1x32xf32>
    %74 = vector.shape_cast %73 : vector<4x1x32xf32> to vector<4x32xf32>
    %75 = vector.extract_strided_slice %54 {offsets = [0, 5, 0], sizes = [4, 1, 32], strides = [1, 1, 1]} : vector<4x17x32xf32> to vector<4x1x32xf32>
    %76 = vector.shape_cast %75 : vector<4x1x32xf32> to vector<4x32xf32>
    %77 = arith.addf %74, %76 : vector<4x32xf32>
    %c0_68 = arith.constant 0 : index
    %c4 = arith.constant 4 : index
    %c0_69 = arith.constant 0 : index
    %78 = vector.load %arg17[%c0_68, %c4, %c0_69] : memref<4x12x32xf32, #tpu.memory_space<vmem>>, vector<4x1x32xf32>
    %79 = vector.shape_cast %78 : vector<4x1x32xf32> to vector<4x32xf32>
    %80 = vector.shape_cast %77 : vector<4x32xf32> to vector<4x1x32xf32>
    tpu.vector_store %arg17[%c0_68, %c4, %c0_69], %80 {strides = array<i32>} : memref<4x12x32xf32, #tpu.memory_space<vmem>>, vector<4x1x32xf32>,
    %81 = vector.extract_strided_slice %54 {offsets = [0, 6, 0], sizes = [4, 1, 32], strides = [1, 1, 1]} : vector<4x17x32xf32> to vector<4x1x32xf32>
    %82 = vector.shape_cast %81 : vector<4x1x32xf32> to vector<4x32xf32>
    %83 = vector.extract_strided_slice %54 {offsets = [0, 7, 0], sizes = [4, 1, 32], strides = [1, 1, 1]} : vector<4x17x32xf32> to vector<4x1x32xf32>
    %84 = vector.shape_cast %83 : vector<4x1x32xf32> to vector<4x32xf32>
    %85 = arith.addf %82, %84 : vector<4x32xf32>
    %c0_70 = arith.constant 0 : index
    %c5 = arith.constant 5 : index
    %c0_71 = arith.constant 0 : index
    %86 = vector.load %arg17[%c0_70, %c5, %c0_71] : memref<4x12x32xf32, #tpu.memory_space<vmem>>, vector<4x1x32xf32>
    %87 = vector.shape_cast %86 : vector<4x1x32xf32> to vector<4x32xf32>
    %88 = vector.shape_cast %85 : vector<4x32xf32> to vector<4x1x32xf32>
    tpu.vector_store %arg17[%c0_70, %c5, %c0_71], %88 {strides = array<i32>} : memref<4x12x32xf32, #tpu.memory_space<vmem>>, vector<4x1x32xf32>,
    %89 = vector.extract_strided_slice %54 {offsets = [0, 8, 0], sizes = [4, 1, 32], strides = [1, 1, 1]} : vector<4x17x32xf32> to vector<4x1x32xf32>
    %90 = vector.shape_cast %89 : vector<4x1x32xf32> to vector<4x32xf32>
    %91 = vector.extract_strided_slice %54 {offsets = [0, 9, 0], sizes = [4, 1, 32], strides = [1, 1, 1]} : vector<4x17x32xf32> to vector<4x1x32xf32>
    %92 = vector.shape_cast %91 : vector<4x1x32xf32> to vector<4x32xf32>
    %93 = arith.addf %90, %92 : vector<4x32xf32>
    %c0_72 = arith.constant 0 : index
    %c6 = arith.constant 6 : index
    %c0_73 = arith.constant 0 : index
    %94 = vector.load %arg17[%c0_72, %c6, %c0_73] : memref<4x12x32xf32, #tpu.memory_space<vmem>>, vector<4x1x32xf32>
    %95 = vector.shape_cast %94 : vector<4x1x32xf32> to vector<4x32xf32>
    %96 = vector.shape_cast %93 : vector<4x32xf32> to vector<4x1x32xf32>
    tpu.vector_store %arg17[%c0_72, %c6, %c0_73], %96 {strides = array<i32>} : memref<4x12x32xf32, #tpu.memory_space<vmem>>, vector<4x1x32xf32>,
    %97 = vector.extract_strided_slice %54 {offsets = [0, 10, 0], sizes = [4, 1, 32], strides = [1, 1, 1]} : vector<4x17x32xf32> to vector<4x1x32xf32>
    %98 = vector.shape_cast %97 : vector<4x1x32xf32> to vector<4x32xf32>
    %99 = vector.extract_strided_slice %54 {offsets = [0, 11, 0], sizes = [4, 1, 32], strides = [1, 1, 1]} : vector<4x17x32xf32> to vector<4x1x32xf32>
    %100 = vector.shape_cast %99 : vector<4x1x32xf32> to vector<4x32xf32>
    %101 = arith.addf %98, %100 : vector<4x32xf32>
    %c0_74 = arith.constant 0 : index
    %c7 = arith.constant 7 : index
    %c0_75 = arith.constant 0 : index
    %102 = vector.load %arg17[%c0_74, %c7, %c0_75] : memref<4x12x32xf32, #tpu.memory_space<vmem>>, vector<4x1x32xf32>
    %103 = vector.shape_cast %102 : vector<4x1x32xf32> to vector<4x32xf32>
    %104 = vector.shape_cast %101 : vector<4x32xf32> to vector<4x1x32xf32>
    tpu.vector_store %arg17[%c0_74, %c7, %c0_75], %104 {strides = array<i32>} : memref<4x12x32xf32, #tpu.memory_space<vmem>>, vector<4x1x32xf32>,
    %105 = vector.extract_strided_slice %54 {offsets = [0, 12, 0], sizes = [4, 1, 32], strides = [1, 1, 1]} : vector<4x17x32xf32> to vector<4x1x32xf32>
    %106 = vector.shape_cast %105 : vector<4x1x32xf32> to vector<4x32xf32>
    %107 = vector.extract_strided_slice %54 {offsets = [0, 13, 0], sizes = [4, 1, 32], strides = [1, 1, 1]} : vector<4x17x32xf32> to vector<4x1x32xf32>
    %108 = vector.shape_cast %107 : vector<4x1x32xf32> to vector<4x32xf32>
    %109 = arith.addf %106, %108 : vector<4x32xf32>
    %c0_76 = arith.constant 0 : index
    %c8 = arith.constant 8 : index
    %c0_77 = arith.constant 0 : index
    %110 = vector.load %arg17[%c0_76, %c8, %c0_77] : memref<4x12x32xf32, #tpu.memory_space<vmem>>, vector<4x1x32xf32>
    %111 = vector.shape_cast %110 : vector<4x1x32xf32> to vector<4x32xf32>
    %112 = vector.shape_cast %109 : vector<4x32xf32> to vector<4x1x32xf32>
    tpu.vector_store %arg17[%c0_76, %c8, %c0_77], %112 {strides = array<i32>} : memref<4x12x32xf32, #tpu.memory_space<vmem>>, vector<4x1x32xf32>,
    %113 = vector.extract_strided_slice %54 {offsets = [0, 14, 0], sizes = [4, 1, 32], strides = [1, 1, 1]} : vector<4x17x32xf32> to vector<4x1x32xf32>
    %114 = vector.shape_cast %113 : vector<4x1x32xf32> to vector<4x32xf32>
    %115 = vector.extract_strided_slice %54 {offsets = [0, 15, 0], sizes = [4, 1, 32], strides = [1, 1, 1]} : vector<4x17x32xf32> to vector<4x1x32xf32>
    %116 = vector.shape_cast %115 : vector<4x1x32xf32> to vector<4x32xf32>
    %117 = arith.addf %114, %116 : vector<4x32xf32>
    %c0_78 = arith.constant 0 : index
    %c9 = arith.constant 9 : index
    %c0_79 = arith.constant 0 : index
    %118 = vector.load %arg17[%c0_78, %c9, %c0_79] : memref<4x12x32xf32, #tpu.memory_space<vmem>>, vector<4x1x32xf32>
    %119 = vector.shape_cast %118 : vector<4x1x32xf32> to vector<4x32xf32>
    %120 = vector.shape_cast %117 : vector<4x32xf32> to vector<4x1x32xf32>
    tpu.vector_store %arg17[%c0_78, %c9, %c0_79], %120 {strides = array<i32>} : memref<4x12x32xf32, #tpu.memory_space<vmem>>, vector<4x1x32xf32>,
    %c0_80 = arith.constant 0 : index
    %c0_81 = arith.constant 0 : index
    %c0_82 = arith.constant 0 : index
    %121 = vector.load %arg17[%c0_80, %c0_81, %c0_82] : memref<4x12x32xf32, #tpu.memory_space<vmem>>, vector<4x9x32xf32>
    %c0_83 = arith.constant 0 : index
    %c0_84 = arith.constant 0 : index
    %c0_85 = arith.constant 0 : index
    %c0_86 = arith.constant 0 : index
    %122 = vector.load %arg2[%c0_83, %c0_84, %c0_85, %c0_86] : memref<4x4x32x72xf32, #tpu.memory_space<vmem>>, vector<1x4x32x72xf32>
    %123 = vector.shape_cast %122 : vector<1x4x32x72xf32> to vector<4x32x72xf32>
    "tpu.trace_start"() <{level = 10 : i32, message = "bhv,bvn->bhn"}> : () -> ()
    %cst_87 = arith.constant dense<0.000000e+00> : vector<4x9x72xf32>
    %124 = tpu.matmul %121, %123, %cst_87 {dimension_numbers = #tpu.dot_dimension_numbers<[2], [1], [1], [2], [0, 0, 0, 1, 1, 2], [0], [0]>} : vector<4x9x32xf32>, vector<4x32x72xf32>, vector<4x9x72xf32> -> vector<4x9x72xf32>
    "tpu.trace_stop"() : () -> ()
    %c0_88 = arith.constant 0 : index
    %c1_89 = arith.constant 1 : index
    %c0_90 = arith.constant 0 : index
    %125 = vector.load %arg17[%c0_88, %c1_89, %c0_90] : memref<4x12x32xf32, #tpu.memory_space<vmem>>, vector<4x9x32xf32>
    %c1_91 = arith.constant 1 : index
    %c0_92 = arith.constant 0 : index
    %c0_93 = arith.constant 0 : index
    %c0_94 = arith.constant 0 : index
    %126 = vector.load %arg2[%c1_91, %c0_92, %c0_93, %c0_94] : memref<4x4x32x72xf32, #tpu.memory_space<vmem>>, vector<1x4x32x72xf32>
    %127 = vector.shape_cast %126 : vector<1x4x32x72xf32> to vector<4x32x72xf32>
    "tpu.trace_start"() <{level = 10 : i32, message = "bhv,bvn->bhn"}> : () -> ()
    %cst_95 = arith.constant dense<0.000000e+00> : vector<4x9x72xf32>
    %128 = tpu.matmul %125, %127, %cst_95 {dimension_numbers = #tpu.dot_dimension_numbers<[2], [1], [1], [2], [0, 0, 0, 1, 1, 2], [0], [0]>} : vector<4x9x32xf32>, vector<4x32x72xf32>, vector<4x9x72xf32> -> vector<4x9x72xf32>
    "tpu.trace_stop"() : () -> ()
    %129 = arith.addf %124, %128 : vector<4x9x72xf32>
    %c0_96 = arith.constant 0 : index
    %c2_97 = arith.constant 2 : index
    %c0_98 = arith.constant 0 : index
    %130 = vector.load %arg17[%c0_96, %c2_97, %c0_98] : memref<4x12x32xf32, #tpu.memory_space<vmem>>, vector<4x9x32xf32>
    %c2_99 = arith.constant 2 : index
    %c0_100 = arith.constant 0 : index
    %c0_101 = arith.constant 0 : index
    %c0_102 = arith.constant 0 : index
    %131 = vector.load %arg2[%c2_99, %c0_100, %c0_101, %c0_102] : memref<4x4x32x72xf32, #tpu.memory_space<vmem>>, vector<1x4x32x72xf32>
    %132 = vector.shape_cast %131 : vector<1x4x32x72xf32> to vector<4x32x72xf32>
    "tpu.trace_start"() <{level = 10 : i32, message = "bhv,bvn->bhn"}> : () -> ()
    %cst_103 = arith.constant dense<0.000000e+00> : vector<4x9x72xf32>
    %133 = tpu.matmul %130, %132, %cst_103 {dimension_numbers = #tpu.dot_dimension_numbers<[2], [1], [1], [2], [0, 0, 0, 1, 1, 2], [0], [0]>} : vector<4x9x32xf32>, vector<4x32x72xf32>, vector<4x9x72xf32> -> vector<4x9x72xf32>
    "tpu.trace_stop"() : () -> ()
    %134 = arith.addf %129, %133 : vector<4x9x72xf32>
    %c0_104 = arith.constant 0 : index
    %c3_105 = arith.constant 3 : index
    %c0_106 = arith.constant 0 : index
    %135 = vector.load %arg17[%c0_104, %c3_105, %c0_106] : memref<4x12x32xf32, #tpu.memory_space<vmem>>, vector<4x9x32xf32>
    %c3_107 = arith.constant 3 : index
    %c0_108 = arith.constant 0 : index
    %c0_109 = arith.constant 0 : index
    %c0_110 = arith.constant 0 : index
    %136 = vector.load %arg2[%c3_107, %c0_108, %c0_109, %c0_110] : memref<4x4x32x72xf32, #tpu.memory_space<vmem>>, vector<1x4x32x72xf32>
    %137 = vector.shape_cast %136 : vector<1x4x32x72xf32> to vector<4x32x72xf32>
    "tpu.trace_start"() <{level = 10 : i32, message = "bhv,bvn->bhn"}> : () -> ()
    %cst_111 = arith.constant dense<0.000000e+00> : vector<4x9x72xf32>
    %138 = tpu.matmul %135, %137, %cst_111 {dimension_numbers = #tpu.dot_dimension_numbers<[2], [1], [1], [2], [0, 0, 0, 1, 1, 2], [0], [0]>} : vector<4x9x32xf32>, vector<4x32x72xf32>, vector<4x9x72xf32> -> vector<4x9x72xf32>
    "tpu.trace_stop"() : () -> ()
    %139 = arith.addf %134, %138 : vector<4x9x72xf32>
    %cst_112 = arith.constant dense<0.000000e+00> : vector<9x72xf32>
    %140 = vector.multi_reduction <add>, %139, %cst_112 [0] : vector<4x9x72xf32> to vector<9x72xf32>
    %cst_113 = arith.constant dense<0.000000e+00> : vector<72xf32>
    %141 = vector.multi_reduction <add>, %140, %cst_113 [0] : vector<9x72xf32> to vector<72xf32>
    %142 = vector.shape_cast %141 : vector<72xf32> to vector<1x72xf32>
    %143 = arith.mulf %139, %139 : vector<4x9x72xf32>
    %cst_114 = arith.constant dense<0.000000e+00> : vector<9x72xf32>
    %144 = vector.multi_reduction <add>, %143, %cst_114 [0] : vector<4x9x72xf32> to vector<9x72xf32>
    %cst_115 = arith.constant dense<0.000000e+00> : vector<72xf32>
    %145 = vector.multi_reduction <add>, %144, %cst_115 [0] : vector<9x72xf32> to vector<72xf32>
    %146 = vector.shape_cast %145 : vector<72xf32> to vector<1x72xf32>
    %c0_116 = arith.constant 0 : index
    %c0_117 = arith.constant 0 : index
    %147 = vector.load %arg6[%c0_116, %c0_117] : memref<72x72xf32, #tpu.memory_space<vmem>>, vector<72x72xf32>
    %cst_118 = arith.constant dense<0.000000e+00> : vector<1x72xf32>
    %148 = tpu.matmul %142, %147, %cst_118 {dimension_numbers = #tpu.dot_dimension_numbers<[1], [0], [0], [1], [0, 0, 1, 1], [], []>} : vector<1x72xf32>, vector<72x72xf32>, vector<1x72xf32> -> vector<1x72xf32>
    %c0_119 = arith.constant 0 : index
    %c0_120 = arith.constant 0 : index
    %149 = vector.load %arg6[%c0_119, %c0_120] : memref<72x72xf32, #tpu.memory_space<vmem>>, vector<72x72xf32>
    %cst_121 = arith.constant dense<0.000000e+00> : vector<1x72xf32>
    %150 = tpu.matmul %146, %149, %cst_121 {dimension_numbers = #tpu.dot_dimension_numbers<[1], [0], [0], [1], [0, 0, 1, 1], [], []>} : vector<1x72xf32>, vector<72x72xf32>, vector<1x72xf32> -> vector<1x72xf32>
    %151 = arith.mulf %148, %148 : vector<1x72xf32>
    %152 = arith.subf %150, %151 : vector<1x72xf32>
    %c0_122 = arith.constant 0 : index
    %c0_123 = arith.constant 0 : index
    %153 = vector.load %arg8[%c0_122, %c0_123] : memref<2x72xf32, #tpu.memory_space<vmem>>, vector<1x72xf32>
    %cst_124 = arith.constant 9.99999974E-6 : f32
    %154 = vector.broadcast %cst_124 : f32 to vector<1x72xf32>
    %155 = arith.addf %152, %154 : vector<1x72xf32>
    %156 = math.rsqrt %155 : vector<1x72xf32>
    %157 = arith.mulf %153, %156 : vector<1x72xf32>
    %c1_125 = arith.constant 1 : index
    %c0_126 = arith.constant 0 : index
    %158 = vector.load %arg8[%c1_125, %c0_126] : memref<2x72xf32, #tpu.memory_space<vmem>>, vector<1x72xf32>
    %159 = arith.mulf %148, %157 : vector<1x72xf32>
    %160 = arith.subf %158, %159 : vector<1x72xf32>
    %161 = vector.shape_cast %157 : vector<1x72xf32> to vector<1x1x72xf32>
    %162 = vector.broadcast %161 : vector<1x1x72xf32> to vector<4x9x72xf32>
    %163 = arith.mulf %139, %162 : vector<4x9x72xf32>
    %164 = vector.shape_cast %160 : vector<1x72xf32> to vector<1x1x72xf32>
    %165 = vector.broadcast %164 : vector<1x1x72xf32> to vector<4x9x72xf32>
    %166 = arith.addf %163, %165 : vector<4x9x72xf32>
    %cst_127 = arith.constant 0.000000e+00 : f32
    %167 = vector.broadcast %cst_127 : f32 to vector<4x9x72xf32>
    %168 = arith.maximumf %166, %167 : vector<4x9x72xf32>
    %c0_128 = arith.constant 0 : index
    %c0_129 = arith.constant 0 : index
    %c0_130 = arith.constant 0 : index
    %169 = vector.load %arg4[%c0_128, %c0_129, %c0_130] : memref<4x72x32xf32, #tpu.memory_space<vmem>>, vector<4x72x32xf32>
    "tpu.trace_start"() <{level = 10 : i32, message = "bhc,bcv->bhv"}> : () -> ()
    %cst_131 = arith.constant dense<0.000000e+00> : vector<4x9x32xf32>
    %170 = tpu.matmul %168, %169, %cst_131 {dimension_numbers = #tpu.dot_dimension_numbers<[2], [1], [1], [2], [0, 0, 0, 1, 1, 2], [0], [0]>} : vector<4x9x72xf32>, vector<4x72x32xf32>, vector<4x9x32xf32> -> vector<4x9x32xf32>
    "tpu.trace_stop"() : () -> ()
    %171 = vector.extract_strided_slice %170 {offsets = [0, 0, 0], sizes = [4, 1, 32], strides = [1, 1, 1]} : vector<4x9x32xf32> to vector<4x1x32xf32>
    %172 = vector.shape_cast %171 : vector<4x1x32xf32> to vector<4x32xf32>
    %173 = vector.extract_strided_slice %170 {offsets = [0, 1, 0], sizes = [4, 1, 32], strides = [1, 1, 1]} : vector<4x9x32xf32> to vector<4x1x32xf32>
    %174 = vector.shape_cast %173 : vector<4x1x32xf32> to vector<4x32xf32>
    %175 = arith.addf %172, %174 : vector<4x32xf32>
    %c0_132 = arith.constant 0 : index
    %c0_133 = arith.constant 0 : index
    %176 = vector.load %arg18[%c0_132, %c0_133] : memref<4x128xf32, #tpu.memory_space<vmem>>, vector<4x32xf32>
    tpu.vector_store %arg18[%c0_132, %c0_133], %175 {strides = array<i32>} : memref<4x128xf32, #tpu.memory_space<vmem>>, vector<4x32xf32>,
    %177 = vector.extract_strided_slice %170 {offsets = [0, 2, 0], sizes = [4, 1, 32], strides = [1, 1, 1]} : vector<4x9x32xf32> to vector<4x1x32xf32>
    %178 = vector.shape_cast %177 : vector<4x1x32xf32> to vector<4x32xf32>
    %179 = vector.extract_strided_slice %170 {offsets = [0, 3, 0], sizes = [4, 1, 32], strides = [1, 1, 1]} : vector<4x9x32xf32> to vector<4x1x32xf32>
    %180 = vector.shape_cast %179 : vector<4x1x32xf32> to vector<4x32xf32>
    %181 = arith.addf %178, %180 : vector<4x32xf32>
    %c0_134 = arith.constant 0 : index
    %c32 = arith.constant 32 : index
    %182 = vector.load %arg18[%c0_134, %c32] : memref<4x128xf32, #tpu.memory_space<vmem>>, vector<4x32xf32>
    tpu.vector_store %arg18[%c0_134, %c32], %181 {strides = array<i32>} : memref<4x128xf32, #tpu.memory_space<vmem>>, vector<4x32xf32>,
    %183 = vector.extract_strided_slice %170 {offsets = [0, 4, 0], sizes = [4, 1, 32], strides = [1, 1, 1]} : vector<4x9x32xf32> to vector<4x1x32xf32>
    %184 = vector.shape_cast %183 : vector<4x1x32xf32> to vector<4x32xf32>
    %185 = vector.extract_strided_slice %170 {offsets = [0, 5, 0], sizes = [4, 1, 32], strides = [1, 1, 1]} : vector<4x9x32xf32> to vector<4x1x32xf32>
    %186 = vector.shape_cast %185 : vector<4x1x32xf32> to vector<4x32xf32>
    %187 = arith.addf %184, %186 : vector<4x32xf32>
    %c0_135 = arith.constant 0 : index
    %c64 = arith.constant 64 : index
    %188 = vector.load %arg18[%c0_135, %c64] : memref<4x128xf32, #tpu.memory_space<vmem>>, vector<4x32xf32>
    tpu.vector_store %arg18[%c0_135, %c64], %187 {strides = array<i32>} : memref<4x128xf32, #tpu.memory_space<vmem>>, vector<4x32xf32>,
    %189 = vector.extract_strided_slice %170 {offsets = [0, 6, 0], sizes = [4, 1, 32], strides = [1, 1, 1]} : vector<4x9x32xf32> to vector<4x1x32xf32>
    %190 = vector.shape_cast %189 : vector<4x1x32xf32> to vector<4x32xf32>
    %191 = vector.extract_strided_slice %170 {offsets = [0, 7, 0], sizes = [4, 1, 32], strides = [1, 1, 1]} : vector<4x9x32xf32> to vector<4x1x32xf32>
    %192 = vector.shape_cast %191 : vector<4x1x32xf32> to vector<4x32xf32>
    %193 = arith.addf %190, %192 : vector<4x32xf32>
    %c0_136 = arith.constant 0 : index
    %c96 = arith.constant 96 : index
    %194 = vector.load %arg18[%c0_136, %c96] : memref<4x128xf32, #tpu.memory_space<vmem>>, vector<4x32xf32>
    tpu.vector_store %arg18[%c0_136, %c96], %193 {strides = array<i32>} : memref<4x128xf32, #tpu.memory_space<vmem>>, vector<4x32xf32>,
    %c0_137 = arith.constant 0 : index
    %c0_138 = arith.constant 0 : index
    %195 = vector.load %arg18[%c0_137, %c0_138] : memref<4x128xf32, #tpu.memory_space<vmem>>, vector<4x128xf32>
    %196 = arith.truncf %195 : vector<4x128xf32> to vector<4x128xbf16>
    %c0_139 = arith.constant 0 : index
    %c0_140 = arith.constant 0 : index
    %197 = vector.load %arg9[%c0_139, %c0_140] : memref<128x64xbf16, #tpu.memory_space<vmem>>, vector<128x64xbf16>
    %cst_141 = arith.constant dense<0.000000e+00> : vector<4x64xf32>
    %198 = tpu.matmul %196, %197, %cst_141 {dimension_numbers = #tpu.dot_dimension_numbers<[1], [0], [0], [1], [0, 0, 1, 1], [], []>} : vector<4x128xbf16>, vector<128x64xbf16>, vector<4x64xf32> -> vector<4x64xf32>
    %cst_142 = arith.constant dense<0.000000e+00> : vector<64xf32>
    %199 = vector.multi_reduction <add>, %198, %cst_142 [0] : vector<4x64xf32> to vector<64xf32>
    %200 = vector.shape_cast %199 : vector<64xf32> to vector<1x64xf32>
    %cst_143 = arith.constant 2.500000e-01 : f32
    %201 = vector.broadcast %cst_143 : f32 to vector<1x64xf32>
    %202 = arith.mulf %200, %201 : vector<1x64xf32>
    %203 = arith.mulf %198, %198 : vector<4x64xf32>
    %cst_144 = arith.constant dense<0.000000e+00> : vector<64xf32>
    %204 = vector.multi_reduction <add>, %203, %cst_144 [0] : vector<4x64xf32> to vector<64xf32>
    %205 = vector.shape_cast %204 : vector<64xf32> to vector<1x64xf32>
    %cst_145 = arith.constant 2.500000e-01 : f32
    %206 = vector.broadcast %cst_145 : f32 to vector<1x64xf32>
    %207 = arith.mulf %205, %206 : vector<1x64xf32>
    %208 = arith.mulf %202, %202 : vector<1x64xf32>
    %209 = arith.subf %207, %208 : vector<1x64xf32>
    %c0_146 = arith.constant 0 : index
    %c0_147 = arith.constant 0 : index
    %210 = vector.load %arg10[%c0_146, %c0_147] : memref<2x64xf32, #tpu.memory_space<vmem>>, vector<1x64xf32>
    %211 = vector.broadcast %202 : vector<1x64xf32> to vector<4x64xf32>
    %212 = arith.subf %198, %211 : vector<4x64xf32>
    %213 = vector.broadcast %210 : vector<1x64xf32> to vector<4x64xf32>
    %214 = arith.mulf %213, %212 : vector<4x64xf32>
    %cst_148 = arith.constant 9.99999974E-6 : f32
    %215 = vector.broadcast %cst_148 : f32 to vector<1x64xf32>
    %216 = arith.addf %209, %215 : vector<1x64xf32>
    %217 = math.rsqrt %216 : vector<1x64xf32>
    %218 = vector.broadcast %217 : vector<1x64xf32> to vector<4x64xf32>
    %219 = arith.mulf %214, %218 : vector<4x64xf32>
    %c1_149 = arith.constant 1 : index
    %c0_150 = arith.constant 0 : index
    %220 = vector.load %arg10[%c1_149, %c0_150] : memref<2x64xf32, #tpu.memory_space<vmem>>, vector<1x64xf32>
    %221 = vector.broadcast %220 : vector<1x64xf32> to vector<4x64xf32>
    %222 = arith.addf %219, %221 : vector<4x64xf32>
    %cst_151 = arith.constant 0.000000e+00 : f32
    %223 = vector.broadcast %cst_151 : f32 to vector<4x64xf32>
    %224 = arith.maximumf %222, %223 : vector<4x64xf32>
    %225 = arith.truncf %224 : vector<4x64xf32> to vector<4x64xbf16>
    %c0_152 = arith.constant 0 : index
    %c0_153 = arith.constant 0 : index
    %226 = vector.load %arg11[%c0_152, %c0_153] : memref<64x32xbf16, #tpu.memory_space<vmem>>, vector<64x32xbf16>
    %cst_154 = arith.constant dense<0.000000e+00> : vector<4x32xf32>
    %227 = tpu.matmul %225, %226, %cst_154 {dimension_numbers = #tpu.dot_dimension_numbers<[1], [0], [0], [1], [0, 0, 1, 1], [], []>} : vector<4x64xbf16>, vector<64x32xbf16>, vector<4x32xf32> -> vector<4x32xf32>
    %cst_155 = arith.constant dense<0.000000e+00> : vector<32xf32>
    %228 = vector.multi_reduction <add>, %227, %cst_155 [0] : vector<4x32xf32> to vector<32xf32>
    %229 = vector.shape_cast %228 : vector<32xf32> to vector<1x32xf32>
    %cst_156 = arith.constant 2.500000e-01 : f32
    %230 = vector.broadcast %cst_156 : f32 to vector<1x32xf32>
    %231 = arith.mulf %229, %230 : vector<1x32xf32>
    %232 = arith.mulf %227, %227 : vector<4x32xf32>
    %cst_157 = arith.constant dense<0.000000e+00> : vector<32xf32>
    %233 = vector.multi_reduction <add>, %232, %cst_157 [0] : vector<4x32xf32> to vector<32xf32>
    %234 = vector.shape_cast %233 : vector<32xf32> to vector<1x32xf32>
    %cst_158 = arith.constant 2.500000e-01 : f32
    %235 = vector.broadcast %cst_158 : f32 to vector<1x32xf32>
    %236 = arith.mulf %234, %235 : vector<1x32xf32>
    %237 = arith.mulf %231, %231 : vector<1x32xf32>
    %238 = arith.subf %236, %237 : vector<1x32xf32>
    %c0_159 = arith.constant 0 : index
    %c0_160 = arith.constant 0 : index
    %239 = vector.load %arg12[%c0_159, %c0_160] : memref<2x32xf32, #tpu.memory_space<vmem>>, vector<1x32xf32>
    %240 = vector.broadcast %231 : vector<1x32xf32> to vector<4x32xf32>
    %241 = arith.subf %227, %240 : vector<4x32xf32>
    %242 = vector.broadcast %239 : vector<1x32xf32> to vector<4x32xf32>
    %243 = arith.mulf %242, %241 : vector<4x32xf32>
    %cst_161 = arith.constant 9.99999974E-6 : f32
    %244 = vector.broadcast %cst_161 : f32 to vector<1x32xf32>
    %245 = arith.addf %238, %244 : vector<1x32xf32>
    %246 = math.rsqrt %245 : vector<1x32xf32>
    %247 = vector.broadcast %246 : vector<1x32xf32> to vector<4x32xf32>
    %248 = arith.mulf %243, %247 : vector<4x32xf32>
    %c1_162 = arith.constant 1 : index
    %c0_163 = arith.constant 0 : index
    %249 = vector.load %arg12[%c1_162, %c0_163] : memref<2x32xf32, #tpu.memory_space<vmem>>, vector<1x32xf32>
    %250 = vector.broadcast %249 : vector<1x32xf32> to vector<4x32xf32>
    %251 = arith.addf %248, %250 : vector<4x32xf32>
    %cst_164 = arith.constant 0.000000e+00 : f32
    %252 = vector.broadcast %cst_164 : f32 to vector<4x32xf32>
    %253 = arith.maximumf %251, %252 : vector<4x32xf32>
    %254 = arith.truncf %253 : vector<4x32xf32> to vector<4x32xbf16>
    %c0_165 = arith.constant 0 : index
    %c0_166 = arith.constant 0 : index
    %255 = vector.load %arg13[%c0_165, %c0_166] : memref<32x128xbf16, #tpu.memory_space<vmem>>, vector<32x128xbf16>
    %cst_167 = arith.constant dense<0.000000e+00> : vector<4x128xf32>
    %256 = tpu.matmul %254, %255, %cst_167 {dimension_numbers = #tpu.dot_dimension_numbers<[1], [0], [0], [1], [0, 0, 1, 1], [], []>} : vector<4x32xbf16>, vector<32x128xbf16>, vector<4x128xf32> -> vector<4x128xf32>
    %c0_168 = arith.constant 0 : index
    %c0_169 = arith.constant 0 : index
    %257 = vector.load %arg14[%c0_168, %c0_169] : memref<1x128xf32, #tpu.memory_space<vmem>>, vector<1x128xf32>
    %258 = vector.broadcast %257 : vector<1x128xf32> to vector<4x128xf32>
    %259 = arith.addf %256, %258 : vector<4x128xf32>
    %c0_170 = arith.constant 0 : index
    %c0_171 = arith.constant 0 : index
    %260 = vector.load %arg15[%c0_170, %c0_171] : memref<4x128xf32, #tpu.memory_space<vmem>>, vector<4x128xf32>
    tpu.vector_store %arg15[%c0_170, %c0_171], %259 {strides = array<i32>} : memref<4x128xf32, #tpu.memory_space<vmem>>, vector<4x128xf32>,
    return
  }
}

</mosaic_0001>

<llo_original>
// kernel: lora_cnn_forward.1
$region0: #{lora_cnn_forward.1}
  #allocation0 [shape = 'u32[]', space=smem, size = 0x4, offset = 0x4, fixed_abs, tag = 'smem constant byte address 0x4 - core index']
  #allocation1 [shape = 'u32[72,128]{1,0:T(1,128)}', space=vmem, size = 0x9000, scoped, tag = 'internal scratch']
  #allocation2 [shape = 'f32[4,20,16]{2,1,0:T(8,128)}', space=vmem, size = 0xc000, scoped, tag = 'scratch operand']
  #allocation3 [shape = 'f32[4,12,32]{2,1,0:T(8,128)}', space=vmem, size = 0x8000, scoped, tag = 'scratch operand']
  #allocation4 [shape = 'f32[4,128]{1,0:T(4,128)}', space=vmem, size = 0x800, scoped, tag = 'scratch operand']
  %s0 = inlined_call_operand.vmem [shape: f32[4,1,16,16], index: 0, kind: input, shape index: {}]
  %s1 = inlined_call_operand.vmem [shape: f32[4,4,16,68], index: 1, kind: input, shape index: {}]
  %s2 = inlined_call_operand.vmem [shape: f32[4,4,32,72], index: 2, kind: input, shape index: {}]
  %s3 = inlined_call_operand.vmem [shape: f32[4,68,32], index: 3, kind: input, shape index: {}]
  %s4 = inlined_call_operand.vmem [shape: f32[4,72,32], index: 4, kind: input, shape index: {}]
  %s5 = inlined_call_operand.vmem [shape: f32[68,68], index: 5, kind: input, shape index: {}]
  %s6 = inlined_call_operand.vmem [shape: f32[72,72], index: 6, kind: input, shape index: {}]
  %s7 = inlined_call_operand.vmem [shape: f32[2,68], index: 7, kind: input, shape index: {}]
  %s8 = inlined_call_operand.vmem [shape: f32[2,72], index: 8, kind: input, shape index: {}]
  %s9 = inlined_call_operand.vmem [shape: bf16[128,64], index: 9, kind: input, shape index: {}]
  %s10 = inlined_call_operand.vmem [shape: f32[2,64], index: 10, kind: input, shape index: {}]
  %s11 = inlined_call_operand.vmem [shape: bf16[64,32], index: 11, kind: input, shape index: {}]
  %s12 = inlined_call_operand.vmem [shape: f32[2,32], index: 12, kind: input, shape index: {}]
  %s13 = inlined_call_operand.vmem [shape: bf16[32,128], index: 13, kind: input, shape index: {}]
  %s14 = inlined_call_operand.vmem [shape: f32[1,128], index: 14, kind: input, shape index: {}]
  %s15 = inlined_call_operand.hbm [shape: f32[4,128], index: 15, kind: output, shape index: {}]
  %s16 = sld [smem:[#allocation0]]
  $region70: #{lora_cnn_forward.1} parent=0
    _
  %s18 = ssub.s32 1, %s16
  %s19 = scalar_select 0, %s18, %s16
  $region1: #{lora_cnn_forward.1} parent=0
    #allocation5 [shape = 'u8[2048]{0}', space=vmem, size = 0x800, scoped, tag = 'output window, operand 0, single buffered']
    #allocation6 [shape = 's32[1]{0}', space=sflag, size = 0x4, scoped, tag = 'scoped memory for lora_cnn_forward.1']
    %20 = vsyncpa [#allocation6], 0
    // Predicated region
    $region2: #{lora_cnn_forward.1} parent=1 // pred_check
      _
    $region3: #{lora_cnn_forward.1} parent=1 // pred_check_branch
      %22 = sbr.rel (0) target = $region5
    $region4: #{lora_cnn_forward.1} parent=1 // pred_region
      _
    $region5: #{lora_cnn_forward.1} parent=1 // pred_fallthru
      _
    // Predicated region
    $region6: #{lora_cnn_forward.1} parent=1 // pred_check
      _
    $region7: #{lora_cnn_forward.1} parent=1 // pred_check_branch
      %24 = sbr.rel (0) target = $region9
    $region8: #{lora_cnn_forward.1} parent=1 // pred_region
      _
    $region9: #{lora_cnn_forward.1} parent=1 // pred_fallthru
      _
    // Predicated region
    $region10: #{lora_cnn_forward.1} parent=1 // pred_check
      _
    $region11: #{lora_cnn_forward.1} parent=1 // pred_check_branch
      %26 = sbr.rel (0) target = $region13
    $region12: #{lora_cnn_forward.1} parent=1 // pred_region
      _
    $region13: #{lora_cnn_forward.1} parent=1 // pred_fallthru
      _
    // Predicated region
    $region14: #{lora_cnn_forward.1} parent=1 // pred_check
      _
    $region15: #{lora_cnn_forward.1} parent=1 // pred_check_branch
      %28 = sbr.rel (0) target = $region17
    $region16: #{lora_cnn_forward.1} parent=1 // pred_region
      _
    $region17: #{lora_cnn_forward.1} parent=1 // pred_fallthru
      _
    // Predicated region
    $region18: #{lora_cnn_forward.1} parent=1 // pred_check
      _
    $region19: #{lora_cnn_forward.1} parent=1 // pred_check_branch
      %30 = sbr.rel (0) target = $region21
    $region20: #{lora_cnn_forward.1} parent=1 // pred_region
      _
    $region21: #{lora_cnn_forward.1} parent=1 // pred_fallthru
      _
    // Predicated region
    $region22: #{lora_cnn_forward.1} parent=1 // pred_check
      _
    $region23: #{lora_cnn_forward.1} parent=1 // pred_check_branch
      %32 = sbr.rel (0) target = $region25
    $region24: #{lora_cnn_forward.1} parent=1 // pred_region
      _
    $region25: #{lora_cnn_forward.1} parent=1 // pred_fallthru
      _
    // Predicated region
    $region26: #{lora_cnn_forward.1} parent=1 // pred_check
      _
    $region27: #{lora_cnn_forward.1} parent=1 // pred_check_branch
      %34 = sbr.rel (0) target = $region29
    $region28: #{lora_cnn_forward.1} parent=1 // pred_region
      _
    $region29: #{lora_cnn_forward.1} parent=1 // pred_fallthru
      _
    // Predicated region
    $region30: #{lora_cnn_forward.1} parent=1 // pred_check
      _
    $region31: #{lora_cnn_forward.1} parent=1 // pred_check_branch
      %36 = sbr.rel (0) target = $region33
    $region32: #{lora_cnn_forward.1} parent=1 // pred_region
      _
    $region33: #{lora_cnn_forward.1} parent=1 // pred_fallthru
      _
    // Predicated region
    $region34: #{lora_cnn_forward.1} parent=1 // pred_check
      _
    $region35: #{lora_cnn_forward.1} parent=1 // pred_check_branch
      %38 = sbr.rel (0) target = $region37
    $region36: #{lora_cnn_forward.1} parent=1 // pred_region
      _
    $region37: #{lora_cnn_forward.1} parent=1 // pred_fallthru
      _
    // Predicated region
    $region38: #{lora_cnn_forward.1} parent=1 // pred_check
      _
    $region39: #{lora_cnn_forward.1} parent=1 // pred_check_branch
      %40 = sbr.rel (0) target = $region41
    $region40: #{lora_cnn_forward.1} parent=1 // pred_region
      _
    $region41: #{lora_cnn_forward.1} parent=1 // pred_fallthru
      _
    // Predicated region
    $region42: #{lora_cnn_forward.1} parent=1 // pred_check
      _
    $region43: #{lora_cnn_forward.1} parent=1 // pred_check_branch
      %42 = sbr.rel (0) target = $region45
    $region44: #{lora_cnn_forward.1} parent=1 // pred_region
      _
    $region45: #{lora_cnn_forward.1} parent=1 // pred_fallthru
      _
    // Predicated region
    $region46: #{lora_cnn_forward.1} parent=1 // pred_check
      _
    $region47: #{lora_cnn_forward.1} parent=1 // pred_check_branch
      %44 = sbr.rel (0) target = $region49
    $region48: #{lora_cnn_forward.1} parent=1 // pred_region
      _
    $region49: #{lora_cnn_forward.1} parent=1 // pred_fallthru
      _
    // Predicated region
    $region50: #{lora_cnn_forward.1} parent=1 // pred_check
      _
    $region51: #{lora_cnn_forward.1} parent=1 // pred_check_branch
      %46 = sbr.rel (0) target = $region53
    $region52: #{lora_cnn_forward.1} parent=1 // pred_region
      _
    $region53: #{lora_cnn_forward.1} parent=1 // pred_fallthru
      _
    // Predicated region
    $region54: #{lora_cnn_forward.1} parent=1 // pred_check
      _
    $region55: #{lora_cnn_forward.1} parent=1 // pred_check_branch
      %48 = sbr.rel (0) target = $region57
    $region56: #{lora_cnn_forward.1} parent=1 // pred_region
      _
    $region57: #{lora_cnn_forward.1} parent=1 // pred_fallthru
      _
    // Predicated region
    $region58: #{lora_cnn_forward.1} parent=1 // pred_check
      _
    $region59: #{lora_cnn_forward.1} parent=1 // pred_check_branch
      %50 = sbr.rel (0) target = $region61
    $region60: #{lora_cnn_forward.1} parent=1 // pred_region
      _
    $region61: #{lora_cnn_forward.1} parent=1 // pred_fallthru
      _
    %vm52 = vcmask 130048
    %53 = vst.msk [vmem:[#allocation2] sm:$0xff] %vm52, 0.0
    %54 = vst.msk [vmem:[#allocation2 + $0x8] sm:$0xff] %vm52, 0.0
    %vm55 = vcmask 125952
    %56 = vst.msk [vmem:[#allocation2 + $0x10] sm:$0xf] %vm55, 0.0
    %57 = vst.msk [vmem:[#allocation2 + $0x18] sm:$0xff] %vm52, 0.0
    %58 = vst.msk [vmem:[#allocation2 + $0x20] sm:$0xff] %vm52, 0.0
    %59 = vst.msk [vmem:[#allocation2 + $0x28] sm:$0xf] %vm55, 0.0
    %60 = vst.msk [vmem:[#allocation2 + $0x30] sm:$0xff] %vm52, 0.0
    %61 = vst.msk [vmem:[#allocation2 + $0x38] sm:$0xff] %vm52, 0.0
    %62 = vst.msk [vmem:[#allocation2 + $0x40] sm:$0xf] %vm55, 0.0
    %63 = vst.msk [vmem:[#allocation2 + $0x48] sm:$0xff] %vm52, 0.0
    %64 = vst.msk [vmem:[#allocation2 + $0x50] sm:$0xff] %vm52, 0.0
    %65 = vst.msk [vmem:[#allocation2 + $0x58] sm:$0xf] %vm55, 0.0
    %v66 = vld [vmem:[%s0] sm:$0xff]
    %v67 = vld [vmem:[%s0 + $0x8] sm:$0xff]
    %v68 = vld [vmem:[%s0 + $0x10] sm:$0xff]
    %v69 = vld [vmem:[%s0 + $0x18] sm:$0xff]
    %v70 = vld [vmem:[%s0 + $0x20] sm:$0xff]
    %v71 = vld [vmem:[%s0 + $0x28] sm:$0xff]
    %v72 = vld [vmem:[%s0 + $0x30] sm:$0xff]
    %v73 = vld [vmem:[%s0 + $0x38] sm:$0xff]
    %74 = vst.msk [vmem:[#allocation2 + $0x2] sm:$0xff] %vm52, %v66
    %75 = vst.msk [vmem:[#allocation2 + $0xa] sm:$0xff] %vm52, %v67
    %76 = vst.msk [vmem:[#allocation2 + $0x1a] sm:$0xff] %vm52, %v68
    %77 = vst.msk [vmem:[#allocation2 + $0x22] sm:$0xff] %vm52, %v69
    %78 = vst.msk [vmem:[#allocation2 + $0x32] sm:$0xff] %vm52, %v70
    %79 = vst.msk [vmem:[#allocation2 + $0x3a] sm:$0xff] %vm52, %v71
    %80 = vst.msk [vmem:[#allocation2 + $0x4a] sm:$0xff] %vm52, %v72
    %81 = vst.msk [vmem:[#allocation2 + $0x52] sm:$0xff] %vm52, %v73
    %v82 = vld [vmem:[#allocation2] sm:$0xff]
    %v83 = vld [vmem:[#allocation2 + $0x8] sm:$0xff]
    %v84 = vld [vmem:[#allocation2 + $0x10] sm:$0x1]
    %v85 = vld [vmem:[#allocation2 + $0x18] sm:$0xff]
    %v86 = vld [vmem:[#allocation2 + $0x20] sm:$0xff]
    %v87 = vld [vmem:[#allocation2 + $0x28] sm:$0x1]
    %v88 = vld [vmem:[#allocation2 + $0x30] sm:$0xff]
    %v89 = vld [vmem:[#allocation2 + $0x38] sm:$0xff]
    %v90 = vld [vmem:[#allocation2 + $0x40] sm:$0x1]
    %v91 = vld [vmem:[#allocation2 + $0x48] sm:$0xff]
    %v92 = vld [vmem:[#allocation2 + $0x50] sm:$0xff]
    %v93 = vld [vmem:[#allocation2 + $0x58] sm:$0x1]
    %v94 = vld [vmem:[%s1] sm:$0xff]
    %v95 = vld [vmem:[%s1 + $0x8] sm:$0xff]
    %v96 = vld [vmem:[%s1 + $0x10] sm:$0xff]
    %v97 = vld [vmem:[%s1 + $0x18] sm:$0xff]
    %v98 = vld [vmem:[%s1 + $0x20] sm:$0xff]
    %v99 = vld [vmem:[%s1 + $0x28] sm:$0xff]
    %v100 = vld [vmem:[%s1 + $0x30] sm:$0xff]
    %v101 = vld [vmem:[%s1 + $0x38] sm:$0xff]
    %v102 = vld [vmem:[#allocation2 + $0x1] sm:$0xff]
    %v103 = vld [vmem:[#allocation2 + $0x9] sm:$0xff]
    %v104 = vld [vmem:[#allocation2 + $0x11] sm:$0x1]
    %v105 = vld [vmem:[#allocation2 + $0x19] sm:$0xff]
    %v106 = vld [vmem:[#allocation2 + $0x21] sm:$0xff]
    %v107 = vld [vmem:[#allocation2 + $0x29] sm:$0x1]
    %v108 = vld [vmem:[#allocation2 + $0x31] sm:$0xff]
    %v109 = vld [vmem:[#allocation2 + $0x39] sm:$0xff]
    %v110 = vld [vmem:[#allocation2 + $0x41] sm:$0x1]
    %v111 = vld [vmem:[#allocation2 + $0x49] sm:$0xff]
    %v112 = vld [vmem:[#allocation2 + $0x51] sm:$0xff]
    %v113 = vld [vmem:[#allocation2 + $0x59] sm:$0x1]
    %s114 = scalar_lea.vmem %s1, 64
    %v115 = vld [vmem:[%s114] sm:$0xff]
    %v116 = vld [vmem:[%s114 + $0x8] sm:$0xff]
    %v117 = vld [vmem:[%s114 + $0x10] sm:$0xff]
    %v118 = vld [vmem:[%s114 + $0x18] sm:$0xff]
    %v119 = vld [vmem:[%s114 + $0x20] sm:$0xff]
    %v120 = vld [vmem:[%s114 + $0x28] sm:$0xff]
    %v121 = vld [vmem:[%s114 + $0x30] sm:$0xff]
    %v122 = vld [vmem:[%s114 + $0x38] sm:$0xff]
    %v124 = vsel %vm52, %v102, 0
    %v127 = vsel %vm52, %v103, 0
    %v130 = vsel %vm52, %v104, 0
    %132 = vmatpush.msra.mxu0 0.0
    %133 = vmatpush.msra.mxu0 0.0
    %134 = vmatpush.msra.mxu0 0.0
    %135 = vmatpush.msra.mxu0 0.0
    %136 = vmatpush.msra.mxu0 0.0
    %137 = vmatpush.msra.mxu0 0.0
    %138 = vmatpush.msra.mxu0 0.0
    %139 = vmatpush.msra.mxu0 0.0
    %140 = vmatpush.msra.mxu0 0.0
    %141 = vmatpush.msra.mxu0 0.0
    %142 = vmatpush.msra.mxu0 0.0
    %143 = vmatpush.msra.mxu0 0.0
    %144 = vmatpush.msra.mxu0 0.0
    %145 = vmatpush.msra.mxu0 0.0
    %146 = vmatpush.msra.mxu0 %v116
    %147 = vmatpush.msra.mxu0 %v115
    %148 = vmatmul.f32.gmra.mxu0 %v124
    %v149 = vpop.f32.mrf.mxu0
    %v150 = vadd.f32 0.0, %v149
    %151 = vmatmul.f32.gmra.mxu0 %v127
    %v152 = vpop.f32.mrf.mxu0
    %v153 = vadd.f32 0.0, %v152
    %154 = vmatmul.f32.gmra.mxu0 %v130
    %v155 = vpop.f32.mrf.mxu0
    %v156 = vadd.f32 0.0, %v155
    %157 = vdwg.mxu0
    %v159 = vsel %vm52, %v105, 0
    %v162 = vsel %vm52, %v106, 0
    %v165 = vsel %vm52, %v107, 0
    %167 = vmatpush.msra.mxu0 0.0
    %168 = vmatpush.msra.mxu0 0.0
    %169 = vmatpush.msra.mxu0 0.0
    %170 = vmatpush.msra.mxu0 0.0
    %171 = vmatpush.msra.mxu0 0.0
    %172 = vmatpush.msra.mxu0 0.0
    %173 = vmatpush.msra.mxu0 0.0
    %174 = vmatpush.msra.mxu0 0.0
    %175 = vmatpush.msra.mxu0 0.0
    %176 = vmatpush.msra.mxu0 0.0
    %177 = vmatpush.msra.mxu0 0.0
    %178 = vmatpush.msra.mxu0 0.0
    %179 = vmatpush.msra.mxu0 0.0
    %180 = vmatpush.msra.mxu0 0.0
    %181 = vmatpush.msra.mxu0 %v118
    %182 = vmatpush.msra.mxu0 %v117
    %183 = vmatmul.f32.gmra.mxu0 %v159
    %v184 = vpop.f32.mrf.mxu0
    %v185 = vadd.f32 0.0, %v184
    %186 = vmatmul.f32.gmra.mxu0 %v162
    %v187 = vpop.f32.mrf.mxu0
    %v188 = vadd.f32 0.0, %v187
    %189 = vmatmul.f32.gmra.mxu0 %v165
    %v190 = vpop.f32.mrf.mxu0
    %v191 = vadd.f32 0.0, %v190
    %192 = vdwg.mxu0
    %v194 = vsel %vm52, %v108, 0
    %v197 = vsel %vm52, %v109, 0
    %v200 = vsel %vm52, %v110, 0
    %202 = vmatpush.msra.mxu0 0.0
    %203 = vmatpush.msra.mxu0 0.0
    %204 = vmatpush.msra.mxu0 0.0
    %205 = vmatpush.msra.mxu0 0.0
    %206 = vmatpush.msra.mxu0 0.0
    %207 = vmatpush.msra.mxu0 0.0
    %208 = vmatpush.msra.mxu0 0.0
    %209 = vmatpush.msra.mxu0 0.0
    %210 = vmatpush.msra.mxu0 0.0
    %211 = vmatpush.msra.mxu0 0.0
    %212 = vmatpush.msra.mxu0 0.0
    %213 = vmatpush.msra.mxu0 0.0
    %214 = vmatpush.msra.mxu0 0.0
    %215 = vmatpush.msra.mxu0 0.0
    %216 = vmatpush.msra.mxu0 %v120
    %217 = vmatpush.msra.mxu0 %v119
    %218 = vmatmul.f32.gmra.mxu0 %v194
    %v219 = vpop.f32.mrf.mxu0
    %v220 = vadd.f32 0.0, %v219
    %221 = vmatmul.f32.gmra.mxu0 %v197
    %v222 = vpop.f32.mrf.mxu0
    %v223 = vadd.f32 0.0, %v222
    %224 = vmatmul.f32.gmra.mxu0 %v200
    %v225 = vpop.f32.mrf.mxu0
    %v226 = vadd.f32 0.0, %v225
    %227 = vdwg.mxu0
    %v229 = vsel %vm52, %v111, 0
    %v232 = vsel %vm52, %v112, 0
    %v235 = vsel %vm52, %v113, 0
    %237 = vmatpush.msra.mxu0 0.0
    %238 = vmatpush.msra.mxu0 0.0
    %239 = vmatpush.msra.mxu0 0.0
    %240 = vmatpush.msra.mxu0 0.0
    %241 = vmatpush.msra.mxu0 0.0
    %242 = vmatpush.msra.mxu0 0.0
    %243 = vmatpush.msra.mxu0 0.0
    %244 = vmatpush.msra.mxu0 0.0
    %245 = vmatpush.msra.mxu0 0.0
    %246 = vmatpush.msra.mxu0 0.0
    %247 = vmatpush.msra.mxu0 0.0
    %248 = vmatpush.msra.mxu0 0.0
    %249 = vmatpush.msra.mxu0 0.0
    %250 = vmatpush.msra.mxu0 0.0
    %251 = vmatpush.msra.mxu0 %v122
    %252 = vmatpush.msra.mxu0 %v121
    %253 = vmatmul.f32.gmra.mxu0 %v229
    %v254 = vpop.f32.mrf.mxu0
    %v255 = vadd.f32 0.0, %v254
    %256 = vmatmul.f32.gmra.mxu0 %v232
    %v257 = vpop.f32.mrf.mxu0
    %v258 = vadd.f32 0.0, %v257
    %259 = vmatmul.f32.gmra.mxu0 %v235
    %v260 = vpop.f32.mrf.mxu0
    %v261 = vadd.f32 0.0, %v260
    %262 = vdwg.mxu0
    %v264 = vsel %vm52, %v82, 0
    %v267 = vsel %vm52, %v83, 0
    %v270 = vsel %vm52, %v84, 0
    %272 = vmatpush.msra.mxu0 0.0
    %273 = vmatpush.msra.mxu0 0.0
    %274 = vmatpush.msra.mxu0 0.0
    %275 = vmatpush.msra.mxu0 0.0
    %276 = vmatpush.msra.mxu0 0.0
    %277 = vmatpush.msra.mxu0 0.0
    %278 = vmatpush.msra.mxu0 0.0
    %279 = vmatpush.msra.mxu0 0.0
    %280 = vmatpush.msra.mxu0 0.0
    %281 = vmatpush.msra.mxu0 0.0
    %282 = vmatpush.msra.mxu0 0.0
    %283 = vmatpush.msra.mxu0 0.0
    %284 = vmatpush.msra.mxu0 0.0
    %285 = vmatpush.msra.mxu0 0.0
    %286 = vmatpush.msra.mxu0 %v95
    %287 = vmatpush.msra.mxu0 %v94
    %288 = vmatmul.f32.gmra.mxu0 %v264
    %v289 = vpop.f32.mrf.mxu0
    %v290 = vadd.f32 %v150, %v289
    %291 = vmatmul.f32.gmra.mxu0 %v267
    %v292 = vpop.f32.mrf.mxu0
    %v293 = vadd.f32 %v153, %v292
    %294 = vmatmul.f32.gmra.mxu0 %v270
    %v295 = vpop.f32.mrf.mxu0
    %v296 = vadd.f32 %v156, %v295
    %297 = vdwg.mxu0
    %v299 = vsel %vm52, %v85, 0
    %v302 = vsel %vm52, %v86, 0
    %v305 = vsel %vm52, %v87, 0
    %307 = vmatpush.msra.mxu0 0.0
    %308 = vmatpush.msra.mxu0 0.0
    %309 = vmatpush.msra.mxu0 0.0
    %310 = vmatpush.msra.mxu0 0.0
    %311 = vmatpush.msra.mxu0 0.0
    %312 = vmatpush.msra.mxu0 0.0
    %313 = vmatpush.msra.mxu0 0.0
    %314 = vmatpush.msra.mxu0 0.0
    %315 = vmatpush.msra.mxu0 0.0
    %316 = vmatpush.msra.mxu0 0.0
    %317 = vmatpush.msra.mxu0 0.0
    %318 = vmatpush.msra.mxu0 0.0
    %319 = vmatpush.msra.mxu0 0.0
    %320 = vmatpush.msra.mxu0 0.0
    %321 = vmatpush.msra.mxu0 %v97
    %322 = vmatpush.msra.mxu0 %v96
    %323 = vmatmul.f32.gmra.mxu0 %v299
    %v324 = vpop.f32.mrf.mxu0
    %v325 = vadd.f32 %v185, %v324
    %326 = vmatmul.f32.gmra.mxu0 %v302
    %v327 = vpop.f32.mrf.mxu0
    %v328 = vadd.f32 %v188, %v327
    %329 = vmatmul.f32.gmra.mxu0 %v305
    %v330 = vpop.f32.mrf.mxu0
    %v331 = vadd.f32 %v191, %v330
    %332 = vdwg.mxu0
    %v334 = vsel %vm52, %v88, 0
    %v337 = vsel %vm52, %v89, 0
    %v340 = vsel %vm52, %v90, 0
    %342 = vmatpush.msra.mxu0 0.0
    %343 = vmatpush.msra.mxu0 0.0
    %344 = vmatpush.msra.mxu0 0.0
    %345 = vmatpush.msra.mxu0 0.0
    %346 = vmatpush.msra.mxu0 0.0
    %347 = vmatpush.msra.mxu0 0.0
    %348 = vmatpush.msra.mxu0 0.0
    %349 = vmatpush.msra.mxu0 0.0
    %350 = vmatpush.msra.mxu0 0.0
    %351 = vmatpush.msra.mxu0 0.0
    %352 = vmatpush.msra.mxu0 0.0
    %353 = vmatpush.msra.mxu0 0.0
    %354 = vmatpush.msra.mxu0 0.0
    %355 = vmatpush.msra.mxu0 0.0
    %356 = vmatpush.msra.mxu0 %v99
    %357 = vmatpush.msra.mxu0 %v98
    %358 = vmatmul.f32.gmra.mxu0 %v334
    %v359 = vpop.f32.mrf.mxu0
    %v360 = vadd.f32 %v220, %v359
    %361 = vmatmul.f32.gmra.mxu0 %v337
    %v362 = vpop.f32.mrf.mxu0
    %v363 = vadd.f32 %v223, %v362
    %364 = vmatmul.f32.gmra.mxu0 %v340
    %v365 = vpop.f32.mrf.mxu0
    %v366 = vadd.f32 %v226, %v365
    %367 = vdwg.mxu0
    %v369 = vsel %vm52, %v91, 0
    %v372 = vsel %vm52, %v92, 0
    %v375 = vsel %vm52, %v93, 0
    %377 = vmatpush.msra.mxu0 0.0
    %378 = vmatpush.msra.mxu0 0.0
    %379 = vmatpush.msra.mxu0 0.0
    %380 = vmatpush.msra.mxu0 0.0
    %381 = vmatpush.msra.mxu0 0.0
    %382 = vmatpush.msra.mxu0 0.0
    %383 = vmatpush.msra.mxu0 0.0
    %384 = vmatpush.msra.mxu0 0.0
    %385 = vmatpush.msra.mxu0 0.0
    %386 = vmatpush.msra.mxu0 0.0
    %387 = vmatpush.msra.mxu0 0.0
    %388 = vmatpush.msra.mxu0 0.0
    %389 = vmatpush.msra.mxu0 0.0
    %390 = vmatpush.msra.mxu0 0.0
    %391 = vmatpush.msra.mxu0 %v101
    %392 = vmatpush.msra.mxu0 %v100
    %393 = vmatmul.f32.gmra.mxu0 %v369
    %v394 = vpop.f32.mrf.mxu0
    %v395 = vadd.f32 %v255, %v394
    %396 = vmatmul.f32.gmra.mxu0 %v372
    %v397 = vpop.f32.mrf.mxu0
    %v398 = vadd.f32 %v258, %v397
    %399 = vmatmul.f32.gmra.mxu0 %v375
    %v400 = vpop.f32.mrf.mxu0
    %v401 = vadd.f32 %v261, %v400
    %402 = vdwg.mxu0
    %v403 = vld [vmem:[#allocation2 + $0x2] sm:$0xff]
    %v404 = vld [vmem:[#allocation2 + $0xa] sm:$0xff]
    %v405 = vld [vmem:[#allocation2 + $0x12] sm:$0x1]
    %v406 = vld [vmem:[#allocation2 + $0x1a] sm:$0xff]
    %v407 = vld [vmem:[#allocation2 + $0x22] sm:$0xff]
    %v408 = vld [vmem:[#allocation2 + $0x2a] sm:$0x1]
    %v409 = vld [vmem:[#allocation2 + $0x32] sm:$0xff]
    %v410 = vld [vmem:[#allocation2 + $0x3a] sm:$0xff]
    %v411 = vld [vmem:[#allocation2 + $0x42] sm:$0x1]
    %v412 = vld [vmem:[#allocation2 + $0x4a] sm:$0xff]
    %v413 = vld [vmem:[#allocation2 + $0x52] sm:$0xff]
    %v414 = vld [vmem:[#allocation2 + $0x5a] sm:$0x1]
    %s415 = scalar_lea.vmem %s1, 128
    %v416 = vld [vmem:[%s415] sm:$0xff]
    %v417 = vld [vmem:[%s415 + $0x8] sm:$0xff]
    %v418 = vld [vmem:[%s415 + $0x10] sm:$0xff]
    %v419 = vld [vmem:[%s415 + $0x18] sm:$0xff]
    %v420 = vld [vmem:[%s415 + $0x20] sm:$0xff]
    %v421 = vld [vmem:[%s415 + $0x28] sm:$0xff]
    %v422 = vld [vmem:[%s415 + $0x30] sm:$0xff]
    %v423 = vld [vmem:[%s415 + $0x38] sm:$0xff]
    %v425 = vsel %vm52, %v403, 0
    %v428 = vsel %vm52, %v404, 0
    %v431 = vsel %vm52, %v405, 0
    %433 = vmatpush.msra.mxu0 0.0
    %434 = vmatpush.msra.mxu0 0.0
    %435 = vmatpush.msra.mxu0 0.0
    %436 = vmatpush.msra.mxu0 0.0
    %437 = vmatpush.msra.mxu0 0.0
    %438 = vmatpush.msra.mxu0 0.0
    %439 = vmatpush.msra.mxu0 0.0
    %440 = vmatpush.msra.mxu0 0.0
    %441 = vmatpush.msra.mxu0 0.0
    %442 = vmatpush.msra.mxu0 0.0
    %443 = vmatpush.msra.mxu0 0.0
    %444 = vmatpush.msra.mxu0 0.0
    %445 = vmatpush.msra.mxu0 0.0
    %446 = vmatpush.msra.mxu0 0.0
    %447 = vmatpush.msra.mxu0 %v417
    %448 = vmatpush.msra.mxu0 %v416
    %449 = vmatmul.f32.gmra.mxu0 %v425
    %v450 = vpop.f32.mrf.mxu0
    %v451 = vadd.f32 0.0, %v450
    %452 = vmatmul.f32.gmra.mxu0 %v428
    %v453 = vpop.f32.mrf.mxu0
    %v454 = vadd.f32 0.0, %v453
    %455 = vmatmul.f32.gmra.mxu0 %v431
    %v456 = vpop.f32.mrf.mxu0
    %v457 = vadd.f32 0.0, %v456
    %458 = vdwg.mxu0
    %v460 = vsel %vm52, %v406, 0
    %v463 = vsel %vm52, %v407, 0
    %v466 = vsel %vm52, %v408, 0
    %468 = vmatpush.msra.mxu0 0.0
    %469 = vmatpush.msra.mxu0 0.0
    %470 = vmatpush.msra.mxu0 0.0
    %471 = vmatpush.msra.mxu0 0.0
    %472 = vmatpush.msra.mxu0 0.0
    %473 = vmatpush.msra.mxu0 0.0
    %474 = vmatpush.msra.mxu0 0.0
    %475 = vmatpush.msra.mxu0 0.0
    %476 = vmatpush.msra.mxu0 0.0
    %477 = vmatpush.msra.mxu0 0.0
    %478 = vmatpush.msra.mxu0 0.0
    %479 = vmatpush.msra.mxu0 0.0
    %480 = vmatpush.msra.mxu0 0.0
    %481 = vmatpush.msra.mxu0 0.0
    %482 = vmatpush.msra.mxu0 %v419
    %483 = vmatpush.msra.mxu0 %v418
    %484 = vmatmul.f32.gmra.mxu0 %v460
    %v485 = vpop.f32.mrf.mxu0
    %v486 = vadd.f32 0.0, %v485
    %487 = vmatmul.f32.gmra.mxu0 %v463
    %v488 = vpop.f32.mrf.mxu0
    %v489 = vadd.f32 0.0, %v488
    %490 = vmatmul.f32.gmra.mxu0 %v466
    %v491 = vpop.f32.mrf.mxu0
    %v492 = vadd.f32 0.0, %v491
    %493 = vdwg.mxu0
    %v495 = vsel %vm52, %v409, 0
    %v498 = vsel %vm52, %v410, 0
    %v501 = vsel %vm52, %v411, 0
    %503 = vmatpush.msra.mxu0 0.0
    %504 = vmatpush.msra.mxu0 0.0
    %505 = vmatpush.msra.mxu0 0.0
    %506 = vmatpush.msra.mxu0 0.0
    %507 = vmatpush.msra.mxu0 0.0
    %508 = vmatpush.msra.mxu0 0.0
    %509 = vmatpush.msra.mxu0 0.0
    %510 = vmatpush.msra.mxu0 0.0
    %511 = vmatpush.msra.mxu0 0.0
    %512 = vmatpush.msra.mxu0 0.0
    %513 = vmatpush.msra.mxu0 0.0
    %514 = vmatpush.msra.mxu0 0.0
    %515 = vmatpush.msra.mxu0 0.0
    %516 = vmatpush.msra.mxu0 0.0
    %517 = vmatpush.msra.mxu0 %v421
    %518 = vmatpush.msra.mxu0 %v420
    %519 = vmatmul.f32.gmra.mxu0 %v495
    %v520 = vpop.f32.mrf.mxu0
    %v521 = vadd.f32 0.0, %v520
    %522 = vmatmul.f32.gmra.mxu0 %v498
    %v523 = vpop.f32.mrf.mxu0
    %v524 = vadd.f32 0.0, %v523
    %525 = vmatmul.f32.gmra.mxu0 %v501
    %v526 = vpop.f32.mrf.mxu0
    %v527 = vadd.f32 0.0, %v526
    %528 = vdwg.mxu0
    %v530 = vsel %vm52, %v412, 0
    %v533 = vsel %vm52, %v413, 0
    %v536 = vsel %vm52, %v414, 0
    %538 = vmatpush.msra.mxu0 0.0
    %539 = vmatpush.msra.mxu0 0.0
    %540 = vmatpush.msra.mxu0 0.0
    %541 = vmatpush.msra.mxu0 0.0
    %542 = vmatpush.msra.mxu0 0.0
    %543 = vmatpush.msra.mxu0 0.0
    %544 = vmatpush.msra.mxu0 0.0
    %545 = vmatpush.msra.mxu0 0.0
    %546 = vmatpush.msra.mxu0 0.0
    %547 = vmatpush.msra.mxu0 0.0
    %548 = vmatpush.msra.mxu0 0.0
    %549 = vmatpush.msra.mxu0 0.0
    %550 = vmatpush.msra.mxu0 0.0
    %551 = vmatpush.msra.mxu0 0.0
    %552 = vmatpush.msra.mxu0 %v423
    %553 = vmatpush.msra.mxu0 %v422
    %554 = vmatmul.f32.gmra.mxu0 %v530
    %v555 = vpop.f32.mrf.mxu0
    %v556 = vadd.f32 0.0, %v555
    %557 = vmatmul.f32.gmra.mxu0 %v533
    %v558 = vpop.f32.mrf.mxu0
    %v559 = vadd.f32 0.0, %v558
    %560 = vmatmul.f32.gmra.mxu0 %v536
    %v561 = vpop.f32.mrf.mxu0
    %v562 = vadd.f32 0.0, %v561
    %563 = vdwg.mxu0
    %v564 = vadd.f32 %v290, %v451
    %v565 = vadd.f32 %v293, %v454
    %v566 = vadd.f32 %v296, %v457
    %v567 = vadd.f32 %v325, %v486
    %v568 = vadd.f32 %v328, %v489
    %v569 = vadd.f32 %v331, %v492
    %v570 = vadd.f32 %v360, %v521
    %v571 = vadd.f32 %v363, %v524
    %v572 = vadd.f32 %v366, %v527
    %v573 = vadd.f32 %v395, %v556
    %v574 = vadd.f32 %v398, %v559
    %v575 = vadd.f32 %v401, %v562
    %v576 = vld [vmem:[#allocation2 + $0x3] sm:$0xff]
    %v577 = vld [vmem:[#allocation2 + $0xb] sm:$0xff]
    %v578 = vld [vmem:[#allocation2 + $0x13] sm:$0x1]
    %v579 = vld [vmem:[#allocation2 + $0x1b] sm:$0xff]
    %v580 = vld [vmem:[#allocation2 + $0x23] sm:$0xff]
    %v581 = vld [vmem:[#allocation2 + $0x2b] sm:$0x1]
    %v582 = vld [vmem:[#allocation2 + $0x33] sm:$0xff]
    %v583 = vld [vmem:[#allocation2 + $0x3b] sm:$0xff]
    %v584 = vld [vmem:[#allocation2 + $0x43] sm:$0x1]
    %v585 = vld [vmem:[#allocation2 + $0x4b] sm:$0xff]
    %v586 = vld [vmem:[#allocation2 + $0x53] sm:$0xff]
    %v587 = vld [vmem:[#allocation2 + $0x5b] sm:$0x1]
    %s588 = scalar_lea.vmem %s1, 192
    %v589 = vld [vmem:[%s588] sm:$0xff]
    %v590 = vld [vmem:[%s588 + $0x8] sm:$0xff]
    %v591 = vld [vmem:[%s588 + $0x10] sm:$0xff]
    %v592 = vld [vmem:[%s588 + $0x18] sm:$0xff]
    %v593 = vld [vmem:[%s588 + $0x20] sm:$0xff]
    %v594 = vld [vmem:[%s588 + $0x28] sm:$0xff]
    %v595 = vld [vmem:[%s588 + $0x30] sm:$0xff]
    %v596 = vld [vmem:[%s588 + $0x38] sm:$0xff]
    %v598 = vsel %vm52, %v576, 0
    %v601 = vsel %vm52, %v577, 0
    %v604 = vsel %vm52, %v578, 0
    %606 = vmatpush.msra.mxu0 0.0
    %607 = vmatpush.msra.mxu0 0.0
    %608 = vmatpush.msra.mxu0 0.0
    %609 = vmatpush.msra.mxu0 0.0
    %610 = vmatpush.msra.mxu0 0.0
    %611 = vmatpush.msra.mxu0 0.0
    %612 = vmatpush.msra.mxu0 0.0
    %613 = vmatpush.msra.mxu0 0.0
    %614 = vmatpush.msra.mxu0 0.0
    %615 = vmatpush.msra.mxu0 0.0
    %616 = vmatpush.msra.mxu0 0.0
    %617 = vmatpush.msra.mxu0 0.0
    %618 = vmatpush.msra.mxu0 0.0
    %619 = vmatpush.msra.mxu0 0.0
    %620 = vmatpush.msra.mxu0 %v590
    %621 = vmatpush.msra.mxu0 %v589
    %622 = vmatmul.f32.gmra.mxu0 %v598
    %v623 = vpop.f32.mrf.mxu0
    %v624 = vadd.f32 0.0, %v623
    %625 = vmatmul.f32.gmra.mxu0 %v601
    %v626 = vpop.f32.mrf.mxu0
    %v627 = vadd.f32 0.0, %v626
    %628 = vmatmul.f32.gmra.mxu0 %v604
    %v629 = vpop.f32.mrf.mxu0
    %v630 = vadd.f32 0.0, %v629
    %631 = vdwg.mxu0
    %v633 = vsel %vm52, %v579, 0
    %v636 = vsel %vm52, %v580, 0
    %v639 = vsel %vm52, %v581, 0
    %641 = vmatpush.msra.mxu0 0.0
    %642 = vmatpush.msra.mxu0 0.0
    %643 = vmatpush.msra.mxu0 0.0
    %644 = vmatpush.msra.mxu0 0.0
    %645 = vmatpush.msra.mxu0 0.0
    %646 = vmatpush.msra.mxu0 0.0
    %647 = vmatpush.msra.mxu0 0.0
    %648 = vmatpush.msra.mxu0 0.0
    %649 = vmatpush.msra.mxu0 0.0
    %650 = vmatpush.msra.mxu0 0.0
    %651 = vmatpush.msra.mxu0 0.0
    %652 = vmatpush.msra.mxu0 0.0
    %653 = vmatpush.msra.mxu0 0.0
    %654 = vmatpush.msra.mxu0 0.0
    %655 = vmatpush.msra.mxu0 %v592
    %656 = vmatpush.msra.mxu0 %v591
    %657 = vmatmul.f32.gmra.mxu0 %v633
    %v658 = vpop.f32.mrf.mxu0
    %v659 = vadd.f32 0.0, %v658
    %660 = vmatmul.f32.gmra.mxu0 %v636
    %v661 = vpop.f32.mrf.mxu0
    %v662 = vadd.f32 0.0, %v661
    %663 = vmatmul.f32.gmra.mxu0 %v639
    %v664 = vpop.f32.mrf.mxu0
    %v665 = vadd.f32 0.0, %v664
    %666 = vdwg.mxu0
    %v668 = vsel %vm52, %v582, 0
    %v671 = vsel %vm52, %v583, 0
    %v674 = vsel %vm52, %v584, 0
    %676 = vmatpush.msra.mxu0 0.0
    %677 = vmatpush.msra.mxu0 0.0
    %678 = vmatpush.msra.mxu0 0.0
    %679 = vmatpush.msra.mxu0 0.0
    %680 = vmatpush.msra.mxu0 0.0
    %681 = vmatpush.msra.mxu0 0.0
    %682 = vmatpush.msra.mxu0 0.0
    %683 = vmatpush.msra.mxu0 0.0
    %684 = vmatpush.msra.mxu0 0.0
    %685 = vmatpush.msra.mxu0 0.0
    %686 = vmatpush.msra.mxu0 0.0
    %687 = vmatpush.msra.mxu0 0.0
    %688 = vmatpush.msra.mxu0 0.0
    %689 = vmatpush.msra.mxu0 0.0
    %690 = vmatpush.msra.mxu0 %v594
    %691 = vmatpush.msra.mxu0 %v593
    %692 = vmatmul.f32.gmra.mxu0 %v668
    %v693 = vpop.f32.mrf.mxu0
    %v694 = vadd.f32 0.0, %v693
    %695 = vmatmul.f32.gmra.mxu0 %v671
    %v696 = vpop.f32.mrf.mxu0
    %v697 = vadd.f32 0.0, %v696
    %698 = vmatmul.f32.gmra.mxu0 %v674
    %v699 = vpop.f32.mrf.mxu0
    %v700 = vadd.f32 0.0, %v699
    %701 = vdwg.mxu0
    %v703 = vsel %vm52, %v585, 0
    %v706 = vsel %vm52, %v586, 0
    %v709 = vsel %vm52, %v587, 0
    %711 = vmatpush.msra.mxu0 0.0
    %712 = vmatpush.msra.mxu0 0.0
    %713 = vmatpush.msra.mxu0 0.0
    %714 = vmatpush.msra.mxu0 0.0
    %715 = vmatpush.msra.mxu0 0.0
    %716 = vmatpush.msra.mxu0 0.0
    %717 = vmatpush.msra.mxu0 0.0
    %718 = vmatpush.msra.mxu0 0.0
    %719 = vmatpush.msra.mxu0 0.0
    %720 = vmatpush.msra.mxu0 0.0
    %721 = vmatpush.msra.mxu0 0.0
    %722 = vmatpush.msra.mxu0 0.0
    %723 = vmatpush.msra.mxu0 0.0
    %724 = vmatpush.msra.mxu0 0.0
    %725 = vmatpush.msra.mxu0 %v596
    %726 = vmatpush.msra.mxu0 %v595
    %727 = vmatmul.f32.gmra.mxu0 %v703
    %v728 = vpop.f32.mrf.mxu0
    %v729 = vadd.f32 0.0, %v728
    %730 = vmatmul.f32.gmra.mxu0 %v706
    %v731 = vpop.f32.mrf.mxu0
    %v732 = vadd.f32 0.0, %v731
    %733 = vmatmul.f32.gmra.mxu0 %v709
    %v734 = vpop.f32.mrf.mxu0
    %v735 = vadd.f32 0.0, %v734
    %736 = vdwg.mxu0
    %v737 = vadd.f32 %v564, %v624
    %v738 = vadd.f32 %v565, %v627
    %v739 = vadd.f32 %v566, %v630
    %v740 = vadd.f32 %v567, %v659
    %v741 = vadd.f32 %v568, %v662
    %v742 = vadd.f32 %v569, %v665
    %v743 = vadd.f32 %v570, %v694
    %v744 = vadd.f32 %v571, %v697
    %v745 = vadd.f32 %v572, %v700
    %v746 = vadd.f32 %v573, %v729
    %v747 = vadd.f32 %v574, %v732
    %v748 = vadd.f32 %v575, %v735
    %vm749 = vcmask 556032
    %v750 = vsel %vm749, %v737, 0.0
    %v751 = vsel %vm749, %v740, 0.0
    %v752 = vadd.f32 %v750, %v751
    %v753 = vsel %vm749, %v743, 0.0
    %v754 = vadd.f32 %v752, %v753
    %v755 = vsel %vm749, %v746, 0.0
    %v756 = vadd.f32 %v754, %v755
    %v757 = vsel %vm749, %v738, 0.0
    %v758 = vsel %vm749, %v741, 0.0
    %v759 = vadd.f32 %v757, %v758
    %v760 = vsel %vm749, %v744, 0.0
    %v761 = vadd.f32 %v759, %v760
    %v762 = vsel %vm749, %v747, 0.0
    %v763 = vadd.f32 %v761, %v762
    %vm764 = vcmask 548864
    %v765 = vsel %vm764, %v739, 0.0
    %v766 = vsel %vm764, %v742, 0.0
    %v767 = vadd.f32 %v765, %v766
    %v768 = vsel %vm764, %v745, 0.0
    %v769 = vadd.f32 %v767, %v768
    %v770 = vsel %vm764, %v748, 0.0
    %v771 = vadd.f32 %v769, %v770
    %v772 = vsel %vm749, %v756, 0.0
    %v773 = vsel %vm749, %v763, 0.0
    %v774 = vadd.f32 %v772, %v773
    %v775 = vsel %vm764, %v771, 0.0
    %v776 = vadd.f32 %v774, %v775
    %v777 = vrot.slane %v776, 4
    %v778 = vadd.f32 %v776, %v777
    %v779 = vrot.slane %v778, 2
    %v780 = vadd.f32 %v778, %v779
    %v781 = vrot.slane %v780, 1
    %v782 = vadd.f32 %v780, %v781
    %v783 = vmul.f32 %v737, %v737
    %v784 = vmul.f32 %v738, %v738
    %v785 = vmul.f32 %v739, %v739
    %v786 = vmul.f32 %v740, %v740
    %v787 = vmul.f32 %v741, %v741
    %v788 = vmul.f32 %v742, %v742
    %v789 = vmul.f32 %v743, %v743
    %v790 = vmul.f32 %v744, %v744
    %v791 = vmul.f32 %v745, %v745
    %v792 = vmul.f32 %v746, %v746
    %v793 = vmul.f32 %v747, %v747
    %v794 = vmul.f32 %v748, %v748
    %v795 = vsel %vm749, %v783, 0.0
    %v796 = vsel %vm749, %v786, 0.0
    %v797 = vadd.f32 %v795, %v796
    %v798 = vsel %vm749, %v789, 0.0
    %v799 = vadd.f32 %v797, %v798
    %v800 = vsel %vm749, %v792, 0.0
    %v801 = vadd.f32 %v799, %v800
    %v802 = vsel %vm749, %v784, 0.0
    %v803 = vsel %vm749, %v787, 0.0
    %v804 = vadd.f32 %v802, %v803
    %v805 = vsel %vm749, %v790, 0.0
    %v806 = vadd.f32 %v804, %v805
    %v807 = vsel %vm749, %v793, 0.0
    %v808 = vadd.f32 %v806, %v807
    %v809 = vsel %vm764, %v785, 0.0
    %v810 = vsel %vm764, %v788, 0.0
    %v811 = vadd.f32 %v809, %v810
    %v812 = vsel %vm764, %v791, 0.0
    %v813 = vadd.f32 %v811, %v812
    %v814 = vsel %vm764, %v794, 0.0
    %v815 = vadd.f32 %v813, %v814
    %v816 = vsel %vm749, %v801, 0.0
    %v817 = vsel %vm749, %v808, 0.0
    %v818 = vadd.f32 %v816, %v817
    %v819 = vsel %vm764, %v815, 0.0
    %v820 = vadd.f32 %v818, %v819
    %v821 = vrot.slane %v820, 4
    %v822 = vadd.f32 %v820, %v821
    %v823 = vrot.slane %v822, 2
    %v824 = vadd.f32 %v822, %v823
    %v825 = vrot.slane %v824, 1
    %v826 = vadd.f32 %v824, %v825
    %v827 = vld [vmem:[%s5] sm:$0xff]
    %v828 = vld [vmem:[%s5 + $0x8] sm:$0xff]
    %v829 = vld [vmem:[%s5 + $0x10] sm:$0xff]
    %v830 = vld [vmem:[%s5 + $0x18] sm:$0xff]
    %v831 = vld [vmem:[%s5 + $0x20] sm:$0xff]
    %v832 = vld [vmem:[%s5 + $0x28] sm:$0xff]
    %v833 = vld [vmem:[%s5 + $0x30] sm:$0xff]
    %v834 = vld [vmem:[%s5 + $0x38] sm:$0xff]
    %v835 = vld [vmem:[%s5 + $0x40] sm:$0xf]
    %v837 = vsel %vm749, %v782, 0
    %vm839 = vcmask 1043456
    %v841 = vsel %vm839, %v835, 0
    %843 = vmatpush.msra.mxu0 0.0
    %844 = vmatpush.msra.mxu0 0.0
    %845 = vmatpush.msra.mxu0 0.0
    %846 = vmatpush.msra.mxu0 0.0
    %847 = vmatpush.msra.mxu0 0.0
    %848 = vmatpush.msra.mxu0 0.0
    %849 = vmatpush.msra.mxu0 0.0
    %850 = vmatpush.msra.mxu0 %v841
    %851 = vmatpush.msra.mxu0 %v834
    %852 = vmatpush.msra.mxu0 %v833
    %853 = vmatpush.msra.mxu0 %v832
    %854 = vmatpush.msra.mxu0 %v831
    %855 = vmatpush.msra.mxu0 %v830
    %856 = vmatpush.msra.mxu0 %v829
    %857 = vmatpush.msra.mxu0 %v828
    %858 = vmatpush.msra.mxu0 %v827
    %859 = vmatmul.f32.gmra.mxu0 %v837
    %v860 = vpop.f32.mrf.mxu0
    %v861 = vadd.f32 0.0, %v860
    %862 = vdwg.mxu0
    %v864 = vsel %vm749, %v826, 0
    %866 = vmatpush.msra.mxu0 0.0
    %867 = vmatpush.msra.mxu0 0.0
    %868 = vmatpush.msra.mxu0 0.0
    %869 = vmatpush.msra.mxu0 0.0
    %870 = vmatpush.msra.mxu0 0.0
    %871 = vmatpush.msra.mxu0 0.0
    %872 = vmatpush.msra.mxu0 0.0
    %873 = vmatpush.msra.mxu0 %v841
    %874 = vmatpush.msra.mxu0 %v834
    %875 = vmatpush.msra.mxu0 %v833
    %876 = vmatpush.msra.mxu0 %v832
    %877 = vmatpush.msra.mxu0 %v831
    %878 = vmatpush.msra.mxu0 %v830
    %879 = vmatpush.msra.mxu0 %v829
    %880 = vmatpush.msra.mxu0 %v828
    %881 = vmatpush.msra.mxu0 %v827
    %882 = vmatmul.f32.gmra.mxu0 %v864
    %v883 = vpop.f32.mrf.mxu0
    %v884 = vadd.f32 0.0, %v883
    %885 = vdwg.mxu0
    %v886 = vmul.f32 %v861, %v861
    %v887 = vsub.f32 %v884, %v886
    %v888 = vld [vmem:[%s7] sm:$0x1]
    %v889 = vadd.f32 %v887, 1e-05
    %v890 = vrsqrt.pop %v889
    %v891 = vmul.f32 %v890, %v889
    %v892 = vmul.f32 %v891, %v890
    %v893 = vmul.f32 0.5, %v892
    %v894 = vsub.f32 1.5, %v893
    %v895 = vmul.f32 %v890, %v894
    %vm896 = vweird.f32 %v889
    %vm897 = vweird.f32 %v890
    %vm898 = vmor %vm896, %vm897
    %v899 = vsel %vm898, %v890, %v895
    %v900 = vmul.f32 %v888, %v899
    %v901 = vld [vmem:[%s7 + $0x1] sm:$0x1]
    %v902 = vmul.f32 %v861, %v900
    %v903 = vsub.f32 %v901, %v902
    %v904 = vperm.slane %v900, 0
    %v905 = vmul.f32 %v737, %v904
    %v906 = vmul.f32 %v738, %v904
    %v907 = vmul.f32 %v739, %v904
    %v908 = vmul.f32 %v740, %v904
    %v909 = vmul.f32 %v741, %v904
    %v910 = vmul.f32 %v742, %v904
    %v911 = vmul.f32 %v743, %v904
    %v912 = vmul.f32 %v744, %v904
    %v913 = vmul.f32 %v745, %v904
    %v914 = vmul.f32 %v746, %v904
    %v915 = vmul.f32 %v747, %v904
    %v916 = vmul.f32 %v748, %v904
    %v917 = vperm.slane %v903, 0
    %v918 = vadd.f32 %v905, %v917
    %v919 = vadd.f32 %v906, %v917
    %v920 = vadd.f32 %v907, %v917
    %v921 = vadd.f32 %v908, %v917
    %v922 = vadd.f32 %v909, %v917
    %v923 = vadd.f32 %v910, %v917
    %v924 = vadd.f32 %v911, %v917
    %v925 = vadd.f32 %v912, %v917
    %v926 = vadd.f32 %v913, %v917
    %v927 = vadd.f32 %v914, %v917
    %v928 = vadd.f32 %v915, %v917
    %v929 = vadd.f32 %v916, %v917
    %v930 = vmax.f32 %v918, 0.0
    %v931 = vmax.f32 %v919, 0.0
    %v932 = vmax.f32 %v920, 0.0
    %v933 = vmax.f32 %v921, 0.0
    %v934 = vmax.f32 %v922, 0.0
    %v935 = vmax.f32 %v923, 0.0
    %v936 = vmax.f32 %v924, 0.0
    %v937 = vmax.f32 %v925, 0.0
    %v938 = vmax.f32 %v926, 0.0
    %v939 = vmax.f32 %v927, 0.0
    %v940 = vmax.f32 %v928, 0.0
    %v941 = vmax.f32 %v929, 0.0
    %v942 = vld [vmem:[%s3] sm:$0xff]
    %v943 = vld [vmem:[%s3 + $0x8] sm:$0xff]
    %v944 = vld [vmem:[%s3 + $0x10] sm:$0xff]
    %v945 = vld [vmem:[%s3 + $0x18] sm:$0xff]
    %v946 = vld [vmem:[%s3 + $0x20] sm:$0xff]
    %v947 = vld [vmem:[%s3 + $0x28] sm:$0xff]
    %v948 = vld [vmem:[%s3 + $0x30] sm:$0xff]
    %v949 = vld [vmem:[%s3 + $0x38] sm:$0xff]
    %v950 = vld [vmem:[%s3 + $0x40] sm:$0xf]
    %v951 = vld [vmem:[%s3 + $0x48] sm:$0xff]
    %v952 = vld [vmem:[%s3 + $0x50] sm:$0xff]
    %v953 = vld [vmem:[%s3 + $0x58] sm:$0xff]
    %v954 = vld [vmem:[%s3 + $0x60] sm:$0xff]
    %v955 = vld [vmem:[%s3 + $0x68] sm:$0xff]
    %v956 = vld [vmem:[%s3 + $0x70] sm:$0xff]
    %v957 = vld [vmem:[%s3 + $0x78] sm:$0xff]
    %v958 = vld [vmem:[%s3 + $0x80] sm:$0xff]
    %v959 = vld [vmem:[%s3 + $0x88] sm:$0xf]
    %v960 = vld [vmem:[%s3 + $0x90] sm:$0xff]
    %v961 = vld [vmem:[%s3 + $0x98] sm:$0xff]
    %v962 = vld [vmem:[%s3 + $0xa0] sm:$0xff]
    %v963 = vld [vmem:[%s3 + $0xa8] sm:$0xff]
    %v964 = vld [vmem:[%s3 + $0xb0] sm:$0xff]
    %v965 = vld [vmem:[%s3 + $0xb8] sm:$0xff]
    %v966 = vld [vmem:[%s3 + $0xc0] sm:$0xff]
    %v967 = vld [vmem:[%s3 + $0xc8] sm:$0xff]
    %v968 = vld [vmem:[%s3 + $0xd0] sm:$0xf]
    %v969 = vld [vmem:[%s3 + $0xd8] sm:$0xff]
    %v970 = vld [vmem:[%s3 + $0xe0] sm:$0xff]
    %v971 = vld [vmem:[%s3 + $0xe8] sm:$0xff]
    %v972 = vld [vmem:[%s3 + $0xf0] sm:$0xff]
    %v973 = vld [vmem:[%s3 + $0xf8] sm:$0xff]
    %v974 = vld [vmem:[%s3 + $0x100] sm:$0xff]
    %v975 = vld [vmem:[%s3 + $0x108] sm:$0xff]
    %v976 = vld [vmem:[%s3 + $0x110] sm:$0xff]
    %v977 = vld [vmem:[%s3 + $0x118] sm:$0xf]
    %v979 = vsel %vm749, %v930, 0
    %v982 = vsel %vm749, %v931, 0
    %v985 = vsel %vm749, %v932, 0
    %v988 = vsel %vm839, %v950, 0
    %990 = vmatpush.msra.mxu0 0.0
    %991 = vmatpush.msra.mxu0 0.0
    %992 = vmatpush.msra.mxu0 0.0
    %993 = vmatpush.msra.mxu0 0.0
    %994 = vmatpush.msra.mxu0 0.0
    %995 = vmatpush.msra.mxu0 0.0
    %996 = vmatpush.msra.mxu0 0.0
    %997 = vmatpush.msra.mxu0 %v988
    %998 = vmatpush.msra.mxu0 %v949
    %999 = vmatpush.msra.mxu0 %v948
    %1000 = vmatpush.msra.mxu0 %v947
    %1001 = vmatpush.msra.mxu0 %v946
    %1002 = vmatpush.msra.mxu0 %v945
    %1003 = vmatpush.msra.mxu0 %v944
    %1004 = vmatpush.msra.mxu0 %v943
    %1005 = vmatpush.msra.mxu0 %v942
    %1006 = vmatmul.f32.gmra.mxu0 %v979
    %v1007 = vpop.f32.mrf.mxu0
    %v1008 = vadd.f32 0.0, %v1007
    %1009 = vmatmul.f32.gmra.mxu0 %v982
    %v1010 = vpop.f32.mrf.mxu0
    %v1011 = vadd.f32 0.0, %v1010
    %1012 = vmatmul.f32.gmra.mxu0 %v985
    %v1013 = vpop.f32.mrf.mxu0
    %1014 = vdwg.mxu0
    %v1016 = vsel %vm749, %v933, 0
    %v1019 = vsel %vm749, %v934, 0
    %v1022 = vsel %vm749, %v935, 0
    %v1025 = vsel %vm839, %v959, 0
    %1027 = vmatpush.msra.mxu0 0.0
    %1028 = vmatpush.msra.mxu0 0.0
    %1029 = vmatpush.msra.mxu0 0.0
    %1030 = vmatpush.msra.mxu0 0.0
    %1031 = vmatpush.msra.mxu0 0.0
    %1032 = vmatpush.msra.mxu0 0.0
    %1033 = vmatpush.msra.mxu0 0.0
    %1034 = vmatpush.msra.mxu0 %v1025
    %1035 = vmatpush.msra.mxu0 %v958
    %1036 = vmatpush.msra.mxu0 %v957
    %1037 = vmatpush.msra.mxu0 %v956
    %1038 = vmatpush.msra.mxu0 %v955
    %1039 = vmatpush.msra.mxu0 %v954
    %1040 = vmatpush.msra.mxu0 %v953
    %1041 = vmatpush.msra.mxu0 %v952
    %1042 = vmatpush.msra.mxu0 %v951
    %1043 = vmatmul.f32.gmra.mxu0 %v1016
    %v1044 = vpop.f32.mrf.mxu0
    %v1045 = vadd.f32 0.0, %v1044
    %1046 = vmatmul.f32.gmra.mxu0 %v1019
    %v1047 = vpop.f32.mrf.mxu0
    %v1048 = vadd.f32 0.0, %v1047
    %1049 = vmatmul.f32.gmra.mxu0 %v1022
    %v1050 = vpop.f32.mrf.mxu0
    %1051 = vdwg.mxu0
    %v1053 = vsel %vm749, %v936, 0
    %v1056 = vsel %vm749, %v937, 0
    %v1059 = vsel %vm749, %v938, 0
    %v1062 = vsel %vm839, %v968, 0
    %1064 = vmatpush.msra.mxu0 0.0
    %1065 = vmatpush.msra.mxu0 0.0
    %1066 = vmatpush.msra.mxu0 0.0
    %1067 = vmatpush.msra.mxu0 0.0
    %1068 = vmatpush.msra.mxu0 0.0
    %1069 = vmatpush.msra.mxu0 0.0
    %1070 = vmatpush.msra.mxu0 0.0
    %1071 = vmatpush.msra.mxu0 %v1062
    %1072 = vmatpush.msra.mxu0 %v967
    %1073 = vmatpush.msra.mxu0 %v966
    %1074 = vmatpush.msra.mxu0 %v965
    %1075 = vmatpush.msra.mxu0 %v964
    %1076 = vmatpush.msra.mxu0 %v963
    %1077 = vmatpush.msra.mxu0 %v962
    %1078 = vmatpush.msra.mxu0 %v961
    %1079 = vmatpush.msra.mxu0 %v960
    %1080 = vmatmul.f32.gmra.mxu0 %v1053
    %v1081 = vpop.f32.mrf.mxu0
    %v1082 = vadd.f32 0.0, %v1081
    %1083 = vmatmul.f32.gmra.mxu0 %v1056
    %v1084 = vpop.f32.mrf.mxu0
    %v1085 = vadd.f32 0.0, %v1084
    %1086 = vmatmul.f32.gmra.mxu0 %v1059
    %v1087 = vpop.f32.mrf.mxu0
    %1088 = vdwg.mxu0
    %v1090 = vsel %vm749, %v939, 0
    %v1093 = vsel %vm749, %v940, 0
    %v1096 = vsel %vm749, %v941, 0
    %v1099 = vsel %vm839, %v977, 0
    %1101 = vmatpush.msra.mxu0 0.0
    %1102 = vmatpush.msra.mxu0 0.0
    %1103 = vmatpush.msra.mxu0 0.0
    %1104 = vmatpush.msra.mxu0 0.0
    %1105 = vmatpush.msra.mxu0 0.0
    %1106 = vmatpush.msra.mxu0 0.0
    %1107 = vmatpush.msra.mxu0 0.0
    %1108 = vmatpush.msra.mxu0 %v1099
    %1109 = vmatpush.msra.mxu0 %v976
    %1110 = vmatpush.msra.mxu0 %v975
    %1111 = vmatpush.msra.mxu0 %v974
    %1112 = vmatpush.msra.mxu0 %v973
    %1113 = vmatpush.msra.mxu0 %v972
    %1114 = vmatpush.msra.mxu0 %v971
    %1115 = vmatpush.msra.mxu0 %v970
    %1116 = vmatpush.msra.mxu0 %v969
    %1117 = vmatmul.f32.gmra.mxu0 %v1090
    %v1118 = vpop.f32.mrf.mxu0
    %v1119 = vadd.f32 0.0, %v1118
    %1120 = vmatmul.f32.gmra.mxu0 %v1093
    %v1121 = vpop.f32.mrf.mxu0
    %v1122 = vadd.f32 0.0, %v1121
    %1123 = vmatmul.f32.gmra.mxu0 %v1096
    %v1124 = vpop.f32.mrf.mxu0
    %1125 = vdwg.mxu0
    %vm1126 = vcmask 261120
    %1127 = vst.msk [vmem:[#allocation3] sm:$0xff] %vm1126, 0.0
    %vm1128 = vcmask 257024
    %1129 = vst.msk [vmem:[#allocation3 + $0x8] sm:$0xf] %vm1128, 0.0
    %1130 = vst.msk [vmem:[#allocation3 + $0x10] sm:$0xff] %vm1126, 0.0
    %1131 = vst.msk [vmem:[#allocation3 + $0x18] sm:$0xf] %vm1128, 0.0
    %1132 = vst.msk [vmem:[#allocation3 + $0x20] sm:$0xff] %vm1126, 0.0
    %1133 = vst.msk [vmem:[#allocation3 + $0x28] sm:$0xf] %vm1128, 0.0
    %1134 = vst.msk [vmem:[#allocation3 + $0x30] sm:$0xff] %vm1126, 0.0
    %1135 = vst.msk [vmem:[#allocation3 + $0x38] sm:$0xf] %vm1128, 0.0
    %v1140 = vrot.slane %v1008, 1
    %v1141 = vrot.slane %v1045, 1
    %v1142 = vrot.slane %v1082, 1
    %v1143 = vrot.slane %v1119, 1
    %v1148 = vadd.f32 %v1008, %v1140
    %v1149 = vadd.f32 %v1045, %v1141
    %v1150 = vadd.f32 %v1082, %v1142
    %v1151 = vadd.f32 %v1119, %v1143
    %vm1152 = vcmask 253952
    %1153 = vst.msk [vmem:[#allocation3 + $0x2] sm:$0x1] %vm1152, %v1148
    %1154 = vst.msk [vmem:[#allocation3 + $0x12] sm:$0x1] %vm1152, %v1149
    %1155 = vst.msk [vmem:[#allocation3 + $0x22] sm:$0x1] %vm1152, %v1150
    %1156 = vst.msk [vmem:[#allocation3 + $0x32] sm:$0x1] %vm1152, %v1151
    %vm1157 = vcmask 256002
    %1158 = vst.msk [vmem:[#allocation3 + $0x1] sm:$0x4] %vm1157, %v1148
    %1159 = vst.msk [vmem:[#allocation3 + $0x11] sm:$0x4] %vm1157, %v1149
    %1160 = vst.msk [vmem:[#allocation3 + $0x21] sm:$0x4] %vm1157, %v1150
    %1161 = vst.msk [vmem:[#allocation3 + $0x31] sm:$0x4] %vm1157, %v1151
    %vm1162 = vcmask 258052
    %1163 = vst.msk [vmem:[#allocation3] sm:$0x10] %vm1162, %v1148
    %1164 = vst.msk [vmem:[#allocation3 + $0x10] sm:$0x10] %vm1162, %v1149
    %1165 = vst.msk [vmem:[#allocation3 + $0x20] sm:$0x10] %vm1162, %v1150
    %1166 = vst.msk [vmem:[#allocation3 + $0x30] sm:$0x10] %vm1162, %v1151
    %vm1167 = vcmask 260102
    %1168 = vst.msk [vmem:[#allocation3 - $0x1] sm:$0x40] %vm1167, %v1148
    %1169 = vst.msk [vmem:[#allocation3 + $0xf] sm:$0x40] %vm1167, %v1149
    %1170 = vst.msk [vmem:[#allocation3 + $0x1f] sm:$0x40] %vm1167, %v1150
    %1171 = vst.msk [vmem:[#allocation3 + $0x2f] sm:$0x40] %vm1167, %v1151
    %v1176 = vrot.slane %v1011, 1
    %v1177 = vrot.slane %v1048, 1
    %v1178 = vrot.slane %v1085, 1
    %v1179 = vrot.slane %v1122, 1
    %v1184 = vadd.f32 %v1011, %v1176
    %v1185 = vadd.f32 %v1048, %v1177
    %v1186 = vadd.f32 %v1085, %v1178
    %v1187 = vadd.f32 %v1122, %v1179
    %1188 = vst.msk [vmem:[#allocation3 + $0x6] sm:$0x1] %vm1152, %v1184
    %1189 = vst.msk [vmem:[#allocation3 + $0x16] sm:$0x1] %vm1152, %v1185
    %1190 = vst.msk [vmem:[#allocation3 + $0x26] sm:$0x1] %vm1152, %v1186
    %1191 = vst.msk [vmem:[#allocation3 + $0x36] sm:$0x1] %vm1152, %v1187
    %1192 = vst.msk [vmem:[#allocation3 + $0x5] sm:$0x4] %vm1157, %v1184
    %1193 = vst.msk [vmem:[#allocation3 + $0x15] sm:$0x4] %vm1157, %v1185
    %1194 = vst.msk [vmem:[#allocation3 + $0x25] sm:$0x4] %vm1157, %v1186
    %1195 = vst.msk [vmem:[#allocation3 + $0x35] sm:$0x4] %vm1157, %v1187
    %1196 = vst.msk [vmem:[#allocation3 + $0x4] sm:$0x10] %vm1162, %v1184
    %1197 = vst.msk [vmem:[#allocation3 + $0x14] sm:$0x10] %vm1162, %v1185
    %1198 = vst.msk [vmem:[#allocation3 + $0x24] sm:$0x10] %vm1162, %v1186
    %1199 = vst.msk [vmem:[#allocation3 + $0x34] sm:$0x10] %vm1162, %v1187
    %1200 = vst.msk [vmem:[#allocation3 + $0x3] sm:$0x40] %vm1167, %v1184
    %1201 = vst.msk [vmem:[#allocation3 + $0x13] sm:$0x40] %vm1167, %v1185
    %1202 = vst.msk [vmem:[#allocation3 + $0x23] sm:$0x40] %vm1167, %v1186
    %1203 = vst.msk [vmem:[#allocation3 + $0x33] sm:$0x40] %vm1167, %v1187
    %v1204 = vld [vmem:[#allocation3] sm:$0xff]
    %v1205 = vld [vmem:[#allocation3 + $0x8] sm:$0x1]
    %v1206 = vld [vmem:[#allocation3 + $0x10] sm:$0xff]
    %v1207 = vld [vmem:[#allocation3 + $0x18] sm:$0x1]
    %v1208 = vld [vmem:[#allocation3 + $0x20] sm:$0xff]
    %v1209 = vld [vmem:[#allocation3 + $0x28] sm:$0x1]
    %v1210 = vld [vmem:[#allocation3 + $0x30] sm:$0xff]
    %v1211 = vld [vmem:[#allocation3 + $0x38] sm:$0x1]
    %v1212 = vld [vmem:[%s2] sm:$0xff]
    %v1213 = vld [vmem:[%s2 + $0x8] sm:$0xff]
    %v1214 = vld [vmem:[%s2 + $0x10] sm:$0xff]
    %v1215 = vld [vmem:[%s2 + $0x18] sm:$0xff]
    %v1216 = vld [vmem:[%s2 + $0x20] sm:$0xff]
    %v1217 = vld [vmem:[%s2 + $0x28] sm:$0xff]
    %v1218 = vld [vmem:[%s2 + $0x30] sm:$0xff]
    %v1219 = vld [vmem:[%s2 + $0x38] sm:$0xff]
    %v1220 = vld [vmem:[%s2 + $0x40] sm:$0xff]
    %v1221 = vld [vmem:[%s2 + $0x48] sm:$0xff]
    %v1222 = vld [vmem:[%s2 + $0x50] sm:$0xff]
    %v1223 = vld [vmem:[%s2 + $0x58] sm:$0xff]
    %v1224 = vld [vmem:[%s2 + $0x60] sm:$0xff]
    %v1225 = vld [vmem:[%s2 + $0x68] sm:$0xff]
    %v1226 = vld [vmem:[%s2 + $0x70] sm:$0xff]
    %v1227 = vld [vmem:[%s2 + $0x78] sm:$0xff]
    %v1228 = vld [vmem:[#allocation3 + $0x1] sm:$0xff]
    %v1229 = vld [vmem:[#allocation3 + $0x9] sm:$0x1]
    %v1230 = vld [vmem:[#allocation3 + $0x11] sm:$0xff]
    %v1231 = vld [vmem:[#allocation3 + $0x19] sm:$0x1]
    %v1232 = vld [vmem:[#allocation3 + $0x21] sm:$0xff]
    %v1233 = vld [vmem:[#allocation3 + $0x29] sm:$0x1]
    %v1234 = vld [vmem:[#allocation3 + $0x31] sm:$0xff]
    %v1235 = vld [vmem:[#allocation3 + $0x39] sm:$0x1]
    %s1236 = scalar_lea.vmem %s2, 128
    %v1237 = vld [vmem:[%s1236] sm:$0xff]
    %v1238 = vld [vmem:[%s1236 + $0x8] sm:$0xff]
    %v1239 = vld [vmem:[%s1236 + $0x10] sm:$0xff]
    %v1240 = vld [vmem:[%s1236 + $0x18] sm:$0xff]
    %v1241 = vld [vmem:[%s1236 + $0x20] sm:$0xff]
    %v1242 = vld [vmem:[%s1236 + $0x28] sm:$0xff]
    %v1243 = vld [vmem:[%s1236 + $0x30] sm:$0xff]
    %v1244 = vld [vmem:[%s1236 + $0x38] sm:$0xff]
    %v1245 = vld [vmem:[%s1236 + $0x40] sm:$0xff]
    %v1246 = vld [vmem:[%s1236 + $0x48] sm:$0xff]
    %v1247 = vld [vmem:[%s1236 + $0x50] sm:$0xff]
    %v1248 = vld [vmem:[%s1236 + $0x58] sm:$0xff]
    %v1249 = vld [vmem:[%s1236 + $0x60] sm:$0xff]
    %v1250 = vld [vmem:[%s1236 + $0x68] sm:$0xff]
    %v1251 = vld [vmem:[%s1236 + $0x70] sm:$0xff]
    %v1252 = vld [vmem:[%s1236 + $0x78] sm:$0xff]
    %v1254 = vsel %vm1126, %v1228, 0
    %v1257 = vsel %vm1126, %v1229, 0
    %1259 = vmatpush.msra.mxu0 0.0
    %1260 = vmatpush.msra.mxu0 0.0
    %1261 = vmatpush.msra.mxu0 0.0
    %1262 = vmatpush.msra.mxu0 0.0
    %1263 = vmatpush.msra.mxu0 0.0
    %1264 = vmatpush.msra.mxu0 0.0
    %1265 = vmatpush.msra.mxu0 0.0
    %1266 = vmatpush.msra.mxu0 0.0
    %1267 = vmatpush.msra.mxu0 0.0
    %1268 = vmatpush.msra.mxu0 0.0
    %1269 = vmatpush.msra.mxu0 0.0
    %1270 = vmatpush.msra.mxu0 0.0
    %1271 = vmatpush.msra.mxu0 %v1240
    %1272 = vmatpush.msra.mxu0 %v1239
    %1273 = vmatpush.msra.mxu0 %v1238
    %1274 = vmatpush.msra.mxu0 %v1237
    %1275 = vmatmul.f32.gmra.mxu0 %v1254
    %v1276 = vpop.f32.mrf.mxu0
    %v1277 = vadd.f32 0.0, %v1276
    %1278 = vmatmul.f32.gmra.mxu0 %v1257
    %v1279 = vpop.f32.mrf.mxu0
    %v1280 = vadd.f32 0.0, %v1279
    %1281 = vdwg.mxu0
    %v1283 = vsel %vm1126, %v1230, 0
    %v1286 = vsel %vm1126, %v1231, 0
    %1288 = vmatpush.msra.mxu0 0.0
    %1289 = vmatpush.msra.mxu0 0.0
    %1290 = vmatpush.msra.mxu0 0.0
    %1291 = vmatpush.msra.mxu0 0.0
    %1292 = vmatpush.msra.mxu0 0.0
    %1293 = vmatpush.msra.mxu0 0.0
    %1294 = vmatpush.msra.mxu0 0.0
    %1295 = vmatpush.msra.mxu0 0.0
    %1296 = vmatpush.msra.mxu0 0.0
    %1297 = vmatpush.msra.mxu0 0.0
    %1298 = vmatpush.msra.mxu0 0.0
    %1299 = vmatpush.msra.mxu0 0.0
    %1300 = vmatpush.msra.mxu0 %v1244
    %1301 = vmatpush.msra.mxu0 %v1243
    %1302 = vmatpush.msra.mxu0 %v1242
    %1303 = vmatpush.msra.mxu0 %v1241
    %1304 = vmatmul.f32.gmra.mxu0 %v1283
    %v1305 = vpop.f32.mrf.mxu0
    %v1306 = vadd.f32 0.0, %v1305
    %1307 = vmatmul.f32.gmra.mxu0 %v1286
    %v1308 = vpop.f32.mrf.mxu0
    %v1309 = vadd.f32 0.0, %v1308
    %1310 = vdwg.mxu0
    %v1312 = vsel %vm1126, %v1232, 0
    %v1315 = vsel %vm1126, %v1233, 0
    %1317 = vmatpush.msra.mxu0 0.0
    %1318 = vmatpush.msra.mxu0 0.0
    %1319 = vmatpush.msra.mxu0 0.0
    %1320 = vmatpush.msra.mxu0 0.0
    %1321 = vmatpush.msra.mxu0 0.0
    %1322 = vmatpush.msra.mxu0 0.0
    %1323 = vmatpush.msra.mxu0 0.0
    %1324 = vmatpush.msra.mxu0 0.0
    %1325 = vmatpush.msra.mxu0 0.0
    %1326 = vmatpush.msra.mxu0 0.0
    %1327 = vmatpush.msra.mxu0 0.0
    %1328 = vmatpush.msra.mxu0 0.0
    %1329 = vmatpush.msra.mxu0 %v1248
    %1330 = vmatpush.msra.mxu0 %v1247
    %1331 = vmatpush.msra.mxu0 %v1246
    %1332 = vmatpush.msra.mxu0 %v1245
    %1333 = vmatmul.f32.gmra.mxu0 %v1312
    %v1334 = vpop.f32.mrf.mxu0
    %v1335 = vadd.f32 0.0, %v1334
    %1336 = vmatmul.f32.gmra.mxu0 %v1315
    %v1337 = vpop.f32.mrf.mxu0
    %v1338 = vadd.f32 0.0, %v1337
    %1339 = vdwg.mxu0
    %v1341 = vsel %vm1126, %v1234, 0
    %v1344 = vsel %vm1126, %v1235, 0
    %1346 = vmatpush.msra.mxu0 0.0
    %1347 = vmatpush.msra.mxu0 0.0
    %1348 = vmatpush.msra.mxu0 0.0
    %1349 = vmatpush.msra.mxu0 0.0
    %1350 = vmatpush.msra.mxu0 0.0
    %1351 = vmatpush.msra.mxu0 0.0
    %1352 = vmatpush.msra.mxu0 0.0
    %1353 = vmatpush.msra.mxu0 0.0
    %1354 = vmatpush.msra.mxu0 0.0
    %1355 = vmatpush.msra.mxu0 0.0
    %1356 = vmatpush.msra.mxu0 0.0
    %1357 = vmatpush.msra.mxu0 0.0
    %1358 = vmatpush.msra.mxu0 %v1252
    %1359 = vmatpush.msra.mxu0 %v1251
    %1360 = vmatpush.msra.mxu0 %v1250
    %1361 = vmatpush.msra.mxu0 %v1249
    %1362 = vmatmul.f32.gmra.mxu0 %v1341
    %v1363 = vpop.f32.mrf.mxu0
    %v1364 = vadd.f32 0.0, %v1363
    %1365 = vmatmul.f32.gmra.mxu0 %v1344
    %v1366 = vpop.f32.mrf.mxu0
    %v1367 = vadd.f32 0.0, %v1366
    %1368 = vdwg.mxu0
    %v1370 = vsel %vm1126, %v1204, 0
    %v1373 = vsel %vm1126, %v1205, 0
    %1375 = vmatpush.msra.mxu0 0.0
    %1376 = vmatpush.msra.mxu0 0.0
    %1377 = vmatpush.msra.mxu0 0.0
    %1378 = vmatpush.msra.mxu0 0.0
    %1379 = vmatpush.msra.mxu0 0.0
    %1380 = vmatpush.msra.mxu0 0.0
    %1381 = vmatpush.msra.mxu0 0.0
    %1382 = vmatpush.msra.mxu0 0.0
    %1383 = vmatpush.msra.mxu0 0.0
    %1384 = vmatpush.msra.mxu0 0.0
    %1385 = vmatpush.msra.mxu0 0.0
    %1386 = vmatpush.msra.mxu0 0.0
    %1387 = vmatpush.msra.mxu0 %v1215
    %1388 = vmatpush.msra.mxu0 %v1214
    %1389 = vmatpush.msra.mxu0 %v1213
    %1390 = vmatpush.msra.mxu0 %v1212
    %1391 = vmatmul.f32.gmra.mxu0 %v1370
    %v1392 = vpop.f32.mrf.mxu0
    %v1393 = vadd.f32 %v1277, %v1392
    %1394 = vmatmul.f32.gmra.mxu0 %v1373
    %v1395 = vpop.f32.mrf.mxu0
    %v1396 = vadd.f32 %v1280, %v1395
    %1397 = vdwg.mxu0
    %v1399 = vsel %vm1126, %v1206, 0
    %v1402 = vsel %vm1126, %v1207, 0
    %1404 = vmatpush.msra.mxu0 0.0
    %1405 = vmatpush.msra.mxu0 0.0
    %1406 = vmatpush.msra.mxu0 0.0
    %1407 = vmatpush.msra.mxu0 0.0
    %1408 = vmatpush.msra.mxu0 0.0
    %1409 = vmatpush.msra.mxu0 0.0
    %1410 = vmatpush.msra.mxu0 0.0
    %1411 = vmatpush.msra.mxu0 0.0
    %1412 = vmatpush.msra.mxu0 0.0
    %1413 = vmatpush.msra.mxu0 0.0
    %1414 = vmatpush.msra.mxu0 0.0
    %1415 = vmatpush.msra.mxu0 0.0
    %1416 = vmatpush.msra.mxu0 %v1219
    %1417 = vmatpush.msra.mxu0 %v1218
    %1418 = vmatpush.msra.mxu0 %v1217
    %1419 = vmatpush.msra.mxu0 %v1216
    %1420 = vmatmul.f32.gmra.mxu0 %v1399
    %v1421 = vpop.f32.mrf.mxu0
    %v1422 = vadd.f32 %v1306, %v1421
    %1423 = vmatmul.f32.gmra.mxu0 %v1402
    %v1424 = vpop.f32.mrf.mxu0
    %v1425 = vadd.f32 %v1309, %v1424
    %1426 = vdwg.mxu0
    %v1428 = vsel %vm1126, %v1208, 0
    %v1431 = vsel %vm1126, %v1209, 0
    %1433 = vmatpush.msra.mxu0 0.0
    %1434 = vmatpush.msra.mxu0 0.0
    %1435 = vmatpush.msra.mxu0 0.0
    %1436 = vmatpush.msra.mxu0 0.0
    %1437 = vmatpush.msra.mxu0 0.0
    %1438 = vmatpush.msra.mxu0 0.0
    %1439 = vmatpush.msra.mxu0 0.0
    %1440 = vmatpush.msra.mxu0 0.0
    %1441 = vmatpush.msra.mxu0 0.0
    %1442 = vmatpush.msra.mxu0 0.0
    %1443 = vmatpush.msra.mxu0 0.0
    %1444 = vmatpush.msra.mxu0 0.0
    %1445 = vmatpush.msra.mxu0 %v1223
    %1446 = vmatpush.msra.mxu0 %v1222
    %1447 = vmatpush.msra.mxu0 %v1221
    %1448 = vmatpush.msra.mxu0 %v1220
    %1449 = vmatmul.f32.gmra.mxu0 %v1428
    %v1450 = vpop.f32.mrf.mxu0
    %v1451 = vadd.f32 %v1335, %v1450
    %1452 = vmatmul.f32.gmra.mxu0 %v1431
    %v1453 = vpop.f32.mrf.mxu0
    %v1454 = vadd.f32 %v1338, %v1453
    %1455 = vdwg.mxu0
    %v1457 = vsel %vm1126, %v1210, 0
    %v1460 = vsel %vm1126, %v1211, 0
    %1462 = vmatpush.msra.mxu0 0.0
    %1463 = vmatpush.msra.mxu0 0.0
    %1464 = vmatpush.msra.mxu0 0.0
    %1465 = vmatpush.msra.mxu0 0.0
    %1466 = vmatpush.msra.mxu0 0.0
    %1467 = vmatpush.msra.mxu0 0.0
    %1468 = vmatpush.msra.mxu0 0.0
    %1469 = vmatpush.msra.mxu0 0.0
    %1470 = vmatpush.msra.mxu0 0.0
    %1471 = vmatpush.msra.mxu0 0.0
    %1472 = vmatpush.msra.mxu0 0.0
    %1473 = vmatpush.msra.mxu0 0.0
    %1474 = vmatpush.msra.mxu0 %v1227
    %1475 = vmatpush.msra.mxu0 %v1226
    %1476 = vmatpush.msra.mxu0 %v1225
    %1477 = vmatpush.msra.mxu0 %v1224
    %1478 = vmatmul.f32.gmra.mxu0 %v1457
    %v1479 = vpop.f32.mrf.mxu0
    %v1480 = vadd.f32 %v1364, %v1479
    %1481 = vmatmul.f32.gmra.mxu0 %v1460
    %v1482 = vpop.f32.mrf.mxu0
    %v1483 = vadd.f32 %v1367, %v1482
    %1484 = vdwg.mxu0
    %v1485 = vld [vmem:[#allocation3 + $0x2] sm:$0xff]
    %v1486 = vld [vmem:[#allocation3 + $0xa] sm:$0x1]
    %v1487 = vld [vmem:[#allocation3 + $0x12] sm:$0xff]
    %v1488 = vld [vmem:[#allocation3 + $0x1a] sm:$0x1]
    %v1489 = vld [vmem:[#allocation3 + $0x22] sm:$0xff]
    %v1490 = vld [vmem:[#allocation3 + $0x2a] sm:$0x1]
    %v1491 = vld [vmem:[#allocation3 + $0x32] sm:$0xff]
    %v1492 = vld [vmem:[#allocation3 + $0x3a] sm:$0x1]
    %s1493 = scalar_lea.vmem %s2, 256
    %v1494 = vld [vmem:[%s1493] sm:$0xff]
    %v1495 = vld [vmem:[%s1493 + $0x8] sm:$0xff]
    %v1496 = vld [vmem:[%s1493 + $0x10] sm:$0xff]
    %v1497 = vld [vmem:[%s1493 + $0x18] sm:$0xff]
    %v1498 = vld [vmem:[%s1493 + $0x20] sm:$0xff]
    %v1499 = vld [vmem:[%s1493 + $0x28] sm:$0xff]
    %v1500 = vld [vmem:[%s1493 + $0x30] sm:$0xff]
    %v1501 = vld [vmem:[%s1493 + $0x38] sm:$0xff]
    %v1502 = vld [vmem:[%s1493 + $0x40] sm:$0xff]
    %v1503 = vld [vmem:[%s1493 + $0x48] sm:$0xff]
    %v1504 = vld [vmem:[%s1493 + $0x50] sm:$0xff]
    %v1505 = vld [vmem:[%s1493 + $0x58] sm:$0xff]
    %v1506 = vld [vmem:[%s1493 + $0x60] sm:$0xff]
    %v1507 = vld [vmem:[%s1493 + $0x68] sm:$0xff]
    %v1508 = vld [vmem:[%s1493 + $0x70] sm:$0xff]
    %v1509 = vld [vmem:[%s1493 + $0x78] sm:$0xff]
    %v1511 = vsel %vm1126, %v1485, 0
    %v1514 = vsel %vm1126, %v1486, 0
    %1516 = vmatpush.msra.mxu0 0.0
    %1517 = vmatpush.msra.mxu0 0.0
    %1518 = vmatpush.msra.mxu0 0.0
    %1519 = vmatpush.msra.mxu0 0.0
    %1520 = vmatpush.msra.mxu0 0.0
    %1521 = vmatpush.msra.mxu0 0.0
    %1522 = vmatpush.msra.mxu0 0.0
    %1523 = vmatpush.msra.mxu0 0.0
    %1524 = vmatpush.msra.mxu0 0.0
    %1525 = vmatpush.msra.mxu0 0.0
    %1526 = vmatpush.msra.mxu0 0.0
    %1527 = vmatpush.msra.mxu0 0.0
    %1528 = vmatpush.msra.mxu0 %v1497
    %1529 = vmatpush.msra.mxu0 %v1496
    %1530 = vmatpush.msra.mxu0 %v1495
    %1531 = vmatpush.msra.mxu0 %v1494
    %1532 = vmatmul.f32.gmra.mxu0 %v1511
    %v1533 = vpop.f32.mrf.mxu0
    %v1534 = vadd.f32 0.0, %v1533
    %1535 = vmatmul.f32.gmra.mxu0 %v1514
    %v1536 = vpop.f32.mrf.mxu0
    %v1537 = vadd.f32 0.0, %v1536
    %1538 = vdwg.mxu0
    %v1540 = vsel %vm1126, %v1487, 0
    %v1543 = vsel %vm1126, %v1488, 0
    %1545 = vmatpush.msra.mxu0 0.0
    %1546 = vmatpush.msra.mxu0 0.0
    %1547 = vmatpush.msra.mxu0 0.0
    %1548 = vmatpush.msra.mxu0 0.0
    %1549 = vmatpush.msra.mxu0 0.0
    %1550 = vmatpush.msra.mxu0 0.0
    %1551 = vmatpush.msra.mxu0 0.0
    %1552 = vmatpush.msra.mxu0 0.0
    %1553 = vmatpush.msra.mxu0 0.0
    %1554 = vmatpush.msra.mxu0 0.0
    %1555 = vmatpush.msra.mxu0 0.0
    %1556 = vmatpush.msra.mxu0 0.0
    %1557 = vmatpush.msra.mxu0 %v1501
    %1558 = vmatpush.msra.mxu0 %v1500
    %1559 = vmatpush.msra.mxu0 %v1499
    %1560 = vmatpush.msra.mxu0 %v1498
    %1561 = vmatmul.f32.gmra.mxu0 %v1540
    %v1562 = vpop.f32.mrf.mxu0
    %v1563 = vadd.f32 0.0, %v1562
    %1564 = vmatmul.f32.gmra.mxu0 %v1543
    %v1565 = vpop.f32.mrf.mxu0
    %v1566 = vadd.f32 0.0, %v1565
    %1567 = vdwg.mxu0
    %v1569 = vsel %vm1126, %v1489, 0
    %v1572 = vsel %vm1126, %v1490, 0
    %1574 = vmatpush.msra.mxu0 0.0
    %1575 = vmatpush.msra.mxu0 0.0
    %1576 = vmatpush.msra.mxu0 0.0
    %1577 = vmatpush.msra.mxu0 0.0
    %1578 = vmatpush.msra.mxu0 0.0
    %1579 = vmatpush.msra.mxu0 0.0
    %1580 = vmatpush.msra.mxu0 0.0
    %1581 = vmatpush.msra.mxu0 0.0
    %1582 = vmatpush.msra.mxu0 0.0
    %1583 = vmatpush.msra.mxu0 0.0
    %1584 = vmatpush.msra.mxu0 0.0
    %1585 = vmatpush.msra.mxu0 0.0
    %1586 = vmatpush.msra.mxu0 %v1505
    %1587 = vmatpush.msra.mxu0 %v1504
    %1588 = vmatpush.msra.mxu0 %v1503
    %1589 = vmatpush.msra.mxu0 %v1502
    %1590 = vmatmul.f32.gmra.mxu0 %v1569
    %v1591 = vpop.f32.mrf.mxu0
    %v1592 = vadd.f32 0.0, %v1591
    %1593 = vmatmul.f32.gmra.mxu0 %v1572
    %v1594 = vpop.f32.mrf.mxu0
    %v1595 = vadd.f32 0.0, %v1594
    %1596 = vdwg.mxu0
    %v1598 = vsel %vm1126, %v1491, 0
    %v1601 = vsel %vm1126, %v1492, 0
    %1603 = vmatpush.msra.mxu0 0.0
    %1604 = vmatpush.msra.mxu0 0.0
    %1605 = vmatpush.msra.mxu0 0.0
    %1606 = vmatpush.msra.mxu0 0.0
    %1607 = vmatpush.msra.mxu0 0.0
    %1608 = vmatpush.msra.mxu0 0.0
    %1609 = vmatpush.msra.mxu0 0.0
    %1610 = vmatpush.msra.mxu0 0.0
    %1611 = vmatpush.msra.mxu0 0.0
    %1612 = vmatpush.msra.mxu0 0.0
    %1613 = vmatpush.msra.mxu0 0.0
    %1614 = vmatpush.msra.mxu0 0.0
    %1615 = vmatpush.msra.mxu0 %v1509
    %1616 = vmatpush.msra.mxu0 %v1508
    %1617 = vmatpush.msra.mxu0 %v1507
    %1618 = vmatpush.msra.mxu0 %v1506
    %1619 = vmatmul.f32.gmra.mxu0 %v1598
    %v1620 = vpop.f32.mrf.mxu0
    %v1621 = vadd.f32 0.0, %v1620
    %1622 = vmatmul.f32.gmra.mxu0 %v1601
    %v1623 = vpop.f32.mrf.mxu0
    %v1624 = vadd.f32 0.0, %v1623
    %1625 = vdwg.mxu0
    %v1626 = vadd.f32 %v1393, %v1534
    %v1627 = vadd.f32 %v1396, %v1537
    %v1628 = vadd.f32 %v1422, %v1563
    %v1629 = vadd.f32 %v1425, %v1566
    %v1630 = vadd.f32 %v1451, %v1592
    %v1631 = vadd.f32 %v1454, %v1595
    %v1632 = vadd.f32 %v1480, %v1621
    %v1633 = vadd.f32 %v1483, %v1624
    %v1634 = vld [vmem:[#allocation3 + $0x3] sm:$0xff]
    %v1635 = vld [vmem:[#allocation3 + $0xb] sm:$0x1]
    %v1636 = vld [vmem:[#allocation3 + $0x13] sm:$0xff]
    %v1637 = vld [vmem:[#allocation3 + $0x1b] sm:$0x1]
    %v1638 = vld [vmem:[#allocation3 + $0x23] sm:$0xff]
    %v1639 = vld [vmem:[#allocation3 + $0x2b] sm:$0x1]
    %v1640 = vld [vmem:[#allocation3 + $0x33] sm:$0xff]
    %v1641 = vld [vmem:[#allocation3 + $0x3b] sm:$0x1]
    %s1642 = scalar_lea.vmem %s2, 384
    %v1643 = vld [vmem:[%s1642] sm:$0xff]
    %v1644 = vld [vmem:[%s1642 + $0x8] sm:$0xff]
    %v1645 = vld [vmem:[%s1642 + $0x10] sm:$0xff]
    %v1646 = vld [vmem:[%s1642 + $0x18] sm:$0xff]
    %v1647 = vld [vmem:[%s1642 + $0x20] sm:$0xff]
    %v1648 = vld [vmem:[%s1642 + $0x28] sm:$0xff]
    %v1649 = vld [vmem:[%s1642 + $0x30] sm:$0xff]
    %v1650 = vld [vmem:[%s1642 + $0x38] sm:$0xff]
    %v1651 = vld [vmem:[%s1642 + $0x40] sm:$0xff]
    %v1652 = vld [vmem:[%s1642 + $0x48] sm:$0xff]
    %v1653 = vld [vmem:[%s1642 + $0x50] sm:$0xff]
    %v1654 = vld [vmem:[%s1642 + $0x58] sm:$0xff]
    %v1655 = vld [vmem:[%s1642 + $0x60] sm:$0xff]
    %v1656 = vld [vmem:[%s1642 + $0x68] sm:$0xff]
    %v1657 = vld [vmem:[%s1642 + $0x70] sm:$0xff]
    %v1658 = vld [vmem:[%s1642 + $0x78] sm:$0xff]
    %v1660 = vsel %vm1126, %v1634, 0
    %v1663 = vsel %vm1126, %v1635, 0
    %1665 = vmatpush.msra.mxu0 0.0
    %1666 = vmatpush.msra.mxu0 0.0
    %1667 = vmatpush.msra.mxu0 0.0
    %1668 = vmatpush.msra.mxu0 0.0
    %1669 = vmatpush.msra.mxu0 0.0
    %1670 = vmatpush.msra.mxu0 0.0
    %1671 = vmatpush.msra.mxu0 0.0
    %1672 = vmatpush.msra.mxu0 0.0
    %1673 = vmatpush.msra.mxu0 0.0
    %1674 = vmatpush.msra.mxu0 0.0
    %1675 = vmatpush.msra.mxu0 0.0
    %1676 = vmatpush.msra.mxu0 0.0
    %1677 = vmatpush.msra.mxu0 %v1646
    %1678 = vmatpush.msra.mxu0 %v1645
    %1679 = vmatpush.msra.mxu0 %v1644
    %1680 = vmatpush.msra.mxu0 %v1643
    %1681 = vmatmul.f32.gmra.mxu0 %v1660
    %v1682 = vpop.f32.mrf.mxu0
    %v1683 = vadd.f32 0.0, %v1682
    %1684 = vmatmul.f32.gmra.mxu0 %v1663
    %v1685 = vpop.f32.mrf.mxu0
    %v1686 = vadd.f32 0.0, %v1685
    %1687 = vdwg.mxu0
    %v1689 = vsel %vm1126, %v1636, 0
    %v1692 = vsel %vm1126, %v1637, 0
    %1694 = vmatpush.msra.mxu0 0.0
    %1695 = vmatpush.msra.mxu0 0.0
    %1696 = vmatpush.msra.mxu0 0.0
    %1697 = vmatpush.msra.mxu0 0.0
    %1698 = vmatpush.msra.mxu0 0.0
    %1699 = vmatpush.msra.mxu0 0.0
    %1700 = vmatpush.msra.mxu0 0.0
    %1701 = vmatpush.msra.mxu0 0.0
    %1702 = vmatpush.msra.mxu0 0.0
    %1703 = vmatpush.msra.mxu0 0.0
    %1704 = vmatpush.msra.mxu0 0.0
    %1705 = vmatpush.msra.mxu0 0.0
    %1706 = vmatpush.msra.mxu0 %v1650
    %1707 = vmatpush.msra.mxu0 %v1649
    %1708 = vmatpush.msra.mxu0 %v1648
    %1709 = vmatpush.msra.mxu0 %v1647
    %1710 = vmatmul.f32.gmra.mxu0 %v1689
    %v1711 = vpop.f32.mrf.mxu0
    %v1712 = vadd.f32 0.0, %v1711
    %1713 = vmatmul.f32.gmra.mxu0 %v1692
    %v1714 = vpop.f32.mrf.mxu0
    %v1715 = vadd.f32 0.0, %v1714
    %1716 = vdwg.mxu0
    %v1718 = vsel %vm1126, %v1638, 0
    %v1721 = vsel %vm1126, %v1639, 0
    %1723 = vmatpush.msra.mxu0 0.0
    %1724 = vmatpush.msra.mxu0 0.0
    %1725 = vmatpush.msra.mxu0 0.0
    %1726 = vmatpush.msra.mxu0 0.0
    %1727 = vmatpush.msra.mxu0 0.0
    %1728 = vmatpush.msra.mxu0 0.0
    %1729 = vmatpush.msra.mxu0 0.0
    %1730 = vmatpush.msra.mxu0 0.0
    %1731 = vmatpush.msra.mxu0 0.0
    %1732 = vmatpush.msra.mxu0 0.0
    %1733 = vmatpush.msra.mxu0 0.0
    %1734 = vmatpush.msra.mxu0 0.0
    %1735 = vmatpush.msra.mxu0 %v1654
    %1736 = vmatpush.msra.mxu0 %v1653
    %1737 = vmatpush.msra.mxu0 %v1652
    %1738 = vmatpush.msra.mxu0 %v1651
    %1739 = vmatmul.f32.gmra.mxu0 %v1718
    %v1740 = vpop.f32.mrf.mxu0
    %v1741 = vadd.f32 0.0, %v1740
    %1742 = vmatmul.f32.gmra.mxu0 %v1721
    %v1743 = vpop.f32.mrf.mxu0
    %v1744 = vadd.f32 0.0, %v1743
    %1745 = vdwg.mxu0
    %v1747 = vsel %vm1126, %v1640, 0
    %v1750 = vsel %vm1126, %v1641, 0
    %1752 = vmatpush.msra.mxu0 0.0
    %1753 = vmatpush.msra.mxu0 0.0
    %1754 = vmatpush.msra.mxu0 0.0
    %1755 = vmatpush.msra.mxu0 0.0
    %1756 = vmatpush.msra.mxu0 0.0
    %1757 = vmatpush.msra.mxu0 0.0
    %1758 = vmatpush.msra.mxu0 0.0
    %1759 = vmatpush.msra.mxu0 0.0
    %1760 = vmatpush.msra.mxu0 0.0
    %1761 = vmatpush.msra.mxu0 0.0
    %1762 = vmatpush.msra.mxu0 0.0
    %1763 = vmatpush.msra.mxu0 0.0
    %1764 = vmatpush.msra.mxu0 %v1658
    %1765 = vmatpush.msra.mxu0 %v1657
    %1766 = vmatpush.msra.mxu0 %v1656
    %1767 = vmatpush.msra.mxu0 %v1655
    %1768 = vmatmul.f32.gmra.mxu0 %v1747
    %v1769 = vpop.f32.mrf.mxu0
    %v1770 = vadd.f32 0.0, %v1769
    %1771 = vmatmul.f32.gmra.mxu0 %v1750
    %v1772 = vpop.f32.mrf.mxu0
    %v1773 = vadd.f32 0.0, %v1772
    %1774 = vdwg.mxu0
    %v1775 = vadd.f32 %v1626, %v1683
    %v1776 = vadd.f32 %v1627, %v1686
    %v1777 = vadd.f32 %v1628, %v1712
    %v1778 = vadd.f32 %v1629, %v1715
    %v1779 = vadd.f32 %v1630, %v1741
    %v1780 = vadd.f32 %v1631, %v1744
    %v1781 = vadd.f32 %v1632, %v1770
    %v1782 = vadd.f32 %v1633, %v1773
    %vm1783 = vcmask 588800
    %v1784 = vsel %vm1783, %v1775, 0.0
    %v1785 = vsel %vm1783, %v1777, 0.0
    %v1786 = vadd.f32 %v1784, %v1785
    %v1787 = vsel %vm1783, %v1779, 0.0
    %v1788 = vadd.f32 %v1786, %v1787
    %v1789 = vsel %vm1783, %v1781, 0.0
    %v1790 = vadd.f32 %v1788, %v1789
    %vm1791 = vcmask 581632
    %v1792 = vsel %vm1791, %v1776, 0.0
    %v1793 = vsel %vm1791, %v1778, 0.0
    %v1794 = vadd.f32 %v1792, %v1793
    %v1795 = vsel %vm1791, %v1780, 0.0
    %v1796 = vadd.f32 %v1794, %v1795
    %v1797 = vsel %vm1791, %v1782, 0.0
    %v1798 = vadd.f32 %v1796, %v1797
    %v1799 = vsel %vm1783, %v1790, 0.0
    %v1800 = vsel %vm1791, %v1798, 0.0
    %v1801 = vadd.f32 %v1799, %v1800
    %v1802 = vrot.slane %v1801, 4
    %v1803 = vadd.f32 %v1801, %v1802
    %v1804 = vrot.slane %v1803, 2
    %v1805 = vadd.f32 %v1803, %v1804
    %v1806 = vrot.slane %v1805, 1
    %v1807 = vadd.f32 %v1805, %v1806
    %v1808 = vmul.f32 %v1775, %v1775
    %v1809 = vmul.f32 %v1776, %v1776
    %v1810 = vmul.f32 %v1777, %v1777
    %v1811 = vmul.f32 %v1778, %v1778
    %v1812 = vmul.f32 %v1779, %v1779
    %v1813 = vmul.f32 %v1780, %v1780
    %v1814 = vmul.f32 %v1781, %v1781
    %v1815 = vmul.f32 %v1782, %v1782
    %v1816 = vsel %vm1783, %v1808, 0.0
    %v1817 = vsel %vm1783, %v1810, 0.0
    %v1818 = vadd.f32 %v1816, %v1817
    %v1819 = vsel %vm1783, %v1812, 0.0
    %v1820 = vadd.f32 %v1818, %v1819
    %v1821 = vsel %vm1783, %v1814, 0.0
    %v1822 = vadd.f32 %v1820, %v1821
    %v1823 = vsel %vm1791, %v1809, 0.0
    %v1824 = vsel %vm1791, %v1811, 0.0
    %v1825 = vadd.f32 %v1823, %v1824
    %v1826 = vsel %vm1791, %v1813, 0.0
    %v1827 = vadd.f32 %v1825, %v1826
    %v1828 = vsel %vm1791, %v1815, 0.0
    %v1829 = vadd.f32 %v1827, %v1828
    %v1830 = vsel %vm1783, %v1822, 0.0
    %v1831 = vsel %vm1791, %v1829, 0.0
    %v1832 = vadd.f32 %v1830, %v1831
    %v1833 = vrot.slane %v1832, 4
    %v1834 = vadd.f32 %v1832, %v1833
    %v1835 = vrot.slane %v1834, 2
    %v1836 = vadd.f32 %v1834, %v1835
    %v1837 = vrot.slane %v1836, 1
    %v1838 = vadd.f32 %v1836, %v1837
    %v1839 = vld [vmem:[%s6] sm:$0xff]
    %v1840 = vld [vmem:[%s6 + $0x8] sm:$0xff]
    %v1841 = vld [vmem:[%s6 + $0x10] sm:$0xff]
    %v1842 = vld [vmem:[%s6 + $0x18] sm:$0xff]
    %v1843 = vld [vmem:[%s6 + $0x20] sm:$0xff]
    %v1844 = vld [vmem:[%s6 + $0x28] sm:$0xff]
    %v1845 = vld [vmem:[%s6 + $0x30] sm:$0xff]
    %v1846 = vld [vmem:[%s6 + $0x38] sm:$0xff]
    %v1847 = vld [vmem:[%s6 + $0x40] sm:$0xff]
    %v1849 = vsel %vm1783, %v1807, 0
    %1851 = vmatpush.msra.mxu0 0.0
    %1852 = vmatpush.msra.mxu0 0.0
    %1853 = vmatpush.msra.mxu0 0.0
    %1854 = vmatpush.msra.mxu0 0.0
    %1855 = vmatpush.msra.mxu0 0.0
    %1856 = vmatpush.msra.mxu0 0.0
    %1857 = vmatpush.msra.mxu0 0.0
    %1858 = vmatpush.msra.mxu0 %v1847
    %1859 = vmatpush.msra.mxu0 %v1846
    %1860 = vmatpush.msra.mxu0 %v1845
    %1861 = vmatpush.msra.mxu0 %v1844
    %1862 = vmatpush.msra.mxu0 %v1843
    %1863 = vmatpush.msra.mxu0 %v1842
    %1864 = vmatpush.msra.mxu0 %v1841
    %1865 = vmatpush.msra.mxu0 %v1840
    %1866 = vmatpush.msra.mxu0 %v1839
    %1867 = vmatmul.f32.gmra.mxu0 %v1849
    %v1868 = vpop.f32.mrf.mxu0
    %v1869 = vadd.f32 0.0, %v1868
    %1870 = vdwg.mxu0
    %v1872 = vsel %vm1783, %v1838, 0
    %1874 = vmatpush.msra.mxu0 0.0
    %1875 = vmatpush.msra.mxu0 0.0
    %1876 = vmatpush.msra.mxu0 0.0
    %1877 = vmatpush.msra.mxu0 0.0
    %1878 = vmatpush.msra.mxu0 0.0
    %1879 = vmatpush.msra.mxu0 0.0
    %1880 = vmatpush.msra.mxu0 0.0
    %1881 = vmatpush.msra.mxu0 %v1847
    %1882 = vmatpush.msra.mxu0 %v1846
    %1883 = vmatpush.msra.mxu0 %v1845
    %1884 = vmatpush.msra.mxu0 %v1844
    %1885 = vmatpush.msra.mxu0 %v1843
    %1886 = vmatpush.msra.mxu0 %v1842
    %1887 = vmatpush.msra.mxu0 %v1841
    %1888 = vmatpush.msra.mxu0 %v1840
    %1889 = vmatpush.msra.mxu0 %v1839
    %1890 = vmatmul.f32.gmra.mxu0 %v1872
    %v1891 = vpop.f32.mrf.mxu0
    %v1892 = vadd.f32 0.0, %v1891
    %1893 = vdwg.mxu0
    %v1894 = vmul.f32 %v1869, %v1869
    %v1895 = vsub.f32 %v1892, %v1894
    %v1896 = vld [vmem:[%s8] sm:$0x1]
    %v1897 = vadd.f32 %v1895, 1e-05
    %v1898 = vrsqrt.pop %v1897
    %v1899 = vmul.f32 %v1898, %v1897
    %v1900 = vmul.f32 %v1899, %v1898
    %v1901 = vmul.f32 0.5, %v1900
    %v1902 = vsub.f32 1.5, %v1901
    %v1903 = vmul.f32 %v1898, %v1902
    %vm1904 = vweird.f32 %v1897
    %vm1905 = vweird.f32 %v1898
    %vm1906 = vmor %vm1904, %vm1905
    %v1907 = vsel %vm1906, %v1898, %v1903
    %v1908 = vmul.f32 %v1896, %v1907
    %v1909 = vld [vmem:[%s8 + $0x1] sm:$0x1]
    %v1910 = vmul.f32 %v1869, %v1908
    %v1911 = vsub.f32 %v1909, %v1910
    %v1912 = vperm.slane %v1908, 0
    %v1913 = vmul.f32 %v1775, %v1912
    %v1914 = vmul.f32 %v1776, %v1912
    %v1915 = vmul.f32 %v1777, %v1912
    %v1916 = vmul.f32 %v1778, %v1912
    %v1917 = vmul.f32 %v1779, %v1912
    %v1918 = vmul.f32 %v1780, %v1912
    %v1919 = vmul.f32 %v1781, %v1912
    %v1920 = vmul.f32 %v1782, %v1912
    %v1921 = vperm.slane %v1911, 0
    %v1922 = vadd.f32 %v1913, %v1921
    %v1923 = vadd.f32 %v1914, %v1921
    %v1924 = vadd.f32 %v1915, %v1921
    %v1925 = vadd.f32 %v1916, %v1921
    %v1926 = vadd.f32 %v1917, %v1921
    %v1927 = vadd.f32 %v1918, %v1921
    %v1928 = vadd.f32 %v1919, %v1921
    %v1929 = vadd.f32 %v1920, %v1921
    %v1930 = vmax.f32 %v1922, 0.0
    %v1931 = vmax.f32 %v1923, 0.0
    %v1932 = vmax.f32 %v1924, 0.0
    %v1933 = vmax.f32 %v1925, 0.0
    %v1934 = vmax.f32 %v1926, 0.0
    %v1935 = vmax.f32 %v1927, 0.0
    %v1936 = vmax.f32 %v1928, 0.0
    %v1937 = vmax.f32 %v1929, 0.0
    %v1938 = vld [vmem:[%s4] sm:$0xff]
    %v1939 = vld [vmem:[%s4 + $0x8] sm:$0xff]
    %v1940 = vld [vmem:[%s4 + $0x10] sm:$0xff]
    %v1941 = vld [vmem:[%s4 + $0x18] sm:$0xff]
    %v1942 = vld [vmem:[%s4 + $0x20] sm:$0xff]
    %v1943 = vld [vmem:[%s4 + $0x28] sm:$0xff]
    %v1944 = vld [vmem:[%s4 + $0x30] sm:$0xff]
    %v1945 = vld [vmem:[%s4 + $0x38] sm:$0xff]
    %v1946 = vld [vmem:[%s4 + $0x40] sm:$0xff]
    %v1947 = vld [vmem:[%s4 + $0x48] sm:$0xff]
    %v1948 = vld [vmem:[%s4 + $0x50] sm:$0xff]
    %v1949 = vld [vmem:[%s4 + $0x58] sm:$0xff]
    %v1950 = vld [vmem:[%s4 + $0x60] sm:$0xff]
    %v1951 = vld [vmem:[%s4 + $0x68] sm:$0xff]
    %v1952 = vld [vmem:[%s4 + $0x70] sm:$0xff]
    %v1953 = vld [vmem:[%s4 + $0x78] sm:$0xff]
    %v1954 = vld [vmem:[%s4 + $0x80] sm:$0xff]
    %v1955 = vld [vmem:[%s4 + $0x88] sm:$0xff]
    %v1956 = vld [vmem:[%s4 + $0x90] sm:$0xff]
    %v1957 = vld [vmem:[%s4 + $0x98] sm:$0xff]
    %v1958 = vld [vmem:[%s4 + $0xa0] sm:$0xff]
    %v1959 = vld [vmem:[%s4 + $0xa8] sm:$0xff]
    %v1960 = vld [vmem:[%s4 + $0xb0] sm:$0xff]
    %v1961 = vld [vmem:[%s4 + $0xb8] sm:$0xff]
    %v1962 = vld [vmem:[%s4 + $0xc0] sm:$0xff]
    %v1963 = vld [vmem:[%s4 + $0xc8] sm:$0xff]
    %v1964 = vld [vmem:[%s4 + $0xd0] sm:$0xff]
    %v1965 = vld [vmem:[%s4 + $0xd8] sm:$0xff]
    %v1966 = vld [vmem:[%s4 + $0xe0] sm:$0xff]
    %v1967 = vld [vmem:[%s4 + $0xe8] sm:$0xff]
    %v1968 = vld [vmem:[%s4 + $0xf0] sm:$0xff]
    %v1969 = vld [vmem:[%s4 + $0xf8] sm:$0xff]
    %v1970 = vld [vmem:[%s4 + $0x100] sm:$0xff]
    %v1971 = vld [vmem:[%s4 + $0x108] sm:$0xff]
    %v1972 = vld [vmem:[%s4 + $0x110] sm:$0xff]
    %v1973 = vld [vmem:[%s4 + $0x118] sm:$0xff]
    %v1975 = vsel %vm1783, %v1930, 0
    %v1978 = vsel %vm1783, %v1931, 0
    %1980 = vmatpush.msra.mxu0 0.0
    %1981 = vmatpush.msra.mxu0 0.0
    %1982 = vmatpush.msra.mxu0 0.0
    %1983 = vmatpush.msra.mxu0 0.0
    %1984 = vmatpush.msra.mxu0 0.0
    %1985 = vmatpush.msra.mxu0 0.0
    %1986 = vmatpush.msra.mxu0 0.0
    %1987 = vmatpush.msra.mxu0 %v1946
    %1988 = vmatpush.msra.mxu0 %v1945
    %1989 = vmatpush.msra.mxu0 %v1944
    %1990 = vmatpush.msra.mxu0 %v1943
    %1991 = vmatpush.msra.mxu0 %v1942
    %1992 = vmatpush.msra.mxu0 %v1941
    %1993 = vmatpush.msra.mxu0 %v1940
    %1994 = vmatpush.msra.mxu0 %v1939
    %1995 = vmatpush.msra.mxu0 %v1938
    %1996 = vmatmul.f32.gmra.mxu0 %v1975
    %v1997 = vpop.f32.mrf.mxu0
    %v1998 = vadd.f32 0.0, %v1997
    %1999 = vmatmul.f32.gmra.mxu0 %v1978
    %v2000 = vpop.f32.mrf.mxu0
    %2001 = vdwg.mxu0
    %v2003 = vsel %vm1783, %v1932, 0
    %v2006 = vsel %vm1783, %v1933, 0
    %2008 = vmatpush.msra.mxu0 0.0
    %2009 = vmatpush.msra.mxu0 0.0
    %2010 = vmatpush.msra.mxu0 0.0
    %2011 = vmatpush.msra.mxu0 0.0
    %2012 = vmatpush.msra.mxu0 0.0
    %2013 = vmatpush.msra.mxu0 0.0
    %2014 = vmatpush.msra.mxu0 0.0
    %2015 = vmatpush.msra.mxu0 %v1955
    %2016 = vmatpush.msra.mxu0 %v1954
    %2017 = vmatpush.msra.mxu0 %v1953
    %2018 = vmatpush.msra.mxu0 %v1952
    %2019 = vmatpush.msra.mxu0 %v1951
    %2020 = vmatpush.msra.mxu0 %v1950
    %2021 = vmatpush.msra.mxu0 %v1949
    %2022 = vmatpush.msra.mxu0 %v1948
    %2023 = vmatpush.msra.mxu0 %v1947
    %2024 = vmatmul.f32.gmra.mxu0 %v2003
    %v2025 = vpop.f32.mrf.mxu0
    %v2026 = vadd.f32 0.0, %v2025
    %2027 = vmatmul.f32.gmra.mxu0 %v2006
    %v2028 = vpop.f32.mrf.mxu0
    %2029 = vdwg.mxu0
    %v2031 = vsel %vm1783, %v1934, 0
    %v2034 = vsel %vm1783, %v1935, 0
    %2036 = vmatpush.msra.mxu0 0.0
    %2037 = vmatpush.msra.mxu0 0.0
    %2038 = vmatpush.msra.mxu0 0.0
    %2039 = vmatpush.msra.mxu0 0.0
    %2040 = vmatpush.msra.mxu0 0.0
    %2041 = vmatpush.msra.mxu0 0.0
    %2042 = vmatpush.msra.mxu0 0.0
    %2043 = vmatpush.msra.mxu0 %v1964
    %2044 = vmatpush.msra.mxu0 %v1963
    %2045 = vmatpush.msra.mxu0 %v1962
    %2046 = vmatpush.msra.mxu0 %v1961
    %2047 = vmatpush.msra.mxu0 %v1960
    %2048 = vmatpush.msra.mxu0 %v1959
    %2049 = vmatpush.msra.mxu0 %v1958
    %2050 = vmatpush.msra.mxu0 %v1957
    %2051 = vmatpush.msra.mxu0 %v1956
    %2052 = vmatmul.f32.gmra.mxu0 %v2031
    %v2053 = vpop.f32.mrf.mxu0
    %v2054 = vadd.f32 0.0, %v2053
    %2055 = vmatmul.f32.gmra.mxu0 %v2034
    %v2056 = vpop.f32.mrf.mxu0
    %2057 = vdwg.mxu0
    %v2059 = vsel %vm1783, %v1936, 0
    %v2062 = vsel %vm1783, %v1937, 0
    %2064 = vmatpush.msra.mxu0 0.0
    %2065 = vmatpush.msra.mxu0 0.0
    %2066 = vmatpush.msra.mxu0 0.0
    %2067 = vmatpush.msra.mxu0 0.0
    %2068 = vmatpush.msra.mxu0 0.0
    %2069 = vmatpush.msra.mxu0 0.0
    %2070 = vmatpush.msra.mxu0 0.0
    %2071 = vmatpush.msra.mxu0 %v1973
    %2072 = vmatpush.msra.mxu0 %v1972
    %2073 = vmatpush.msra.mxu0 %v1971
    %2074 = vmatpush.msra.mxu0 %v1970
    %2075 = vmatpush.msra.mxu0 %v1969
    %2076 = vmatpush.msra.mxu0 %v1968
    %2077 = vmatpush.msra.mxu0 %v1967
    %2078 = vmatpush.msra.mxu0 %v1966
    %2079 = vmatpush.msra.mxu0 %v1965
    %2080 = vmatmul.f32.gmra.mxu0 %v2059
    %v2081 = vpop.f32.mrf.mxu0
    %v2082 = vadd.f32 0.0, %v2081
    %2083 = vmatmul.f32.gmra.mxu0 %v2062
    %v2084 = vpop.f32.mrf.mxu0
    %2085 = vdwg.mxu0
    %v2090 = vrot.slane %v1998, 1
    %v2091 = vrot.slane %v2026, 1
    %v2092 = vrot.slane %v2054, 1
    %v2093 = vrot.slane %v2082, 1
    %v2098 = vadd.f32 %v1998, %v2090
    %v2099 = vadd.f32 %v2026, %v2091
    %v2100 = vadd.f32 %v2054, %v2092
    %v2101 = vadd.f32 %v2082, %v2093
    %v2106 = vrot.slane %v2099, 7
    %vm2107 = vcmask 1041409
    %v2108 = vsel %vm2107, %v2106, %v2098
    %v2109 = vrot.slane %v2100, 6
    %vm2110 = vcmask 1042434
    %v2111 = vsel %vm2110, %v2109, %v2108
    %v2112 = vrot.slane %v2101, 5
    %vm2113 = vcmask 1043459
    %v2114 = vsel %vm2113, %v2112, %v2111
    %2116 = vst.msk [vmem:[#allocation4] sm:$0xf] %vm1128, %v2114
    %v2117 = vsel %vm2113, %v2106, %v2098
    %vm2118 = vcmask 1044484
    %v2119 = vsel %vm2118, %v2109, %v2117
    %vm2120 = vcmask 1045509
    %v2121 = vsel %vm2120, %v2112, %v2119
    %2122 = vrot.lane.b32.xlu0 %v2121, 32
    %v2123 = vpop.permute.xlu0 %2122
    %vm2125 = vcmask 521474
    %2126 = vst.msk [vmem:[#allocation4 - $0x2] sm:$0x3c] %vm2125, %v2123
    %v2127 = vsel %vm2120, %v2106, %v2098
    %vm2128 = vcmask 1046534
    %v2129 = vsel %vm2128, %v2109, %v2127
    %vm2130 = vcmask 1047559
    %v2131 = vsel %vm2130, %v2112, %v2129
    %2132 = vrot.lane.b32.xlu0 %v2131, 64
    %v2133 = vpop.permute.xlu0 %2132
    %vm2135 = vcmask 785924
    %2136 = vst.msk [vmem:[#allocation4 - $0x4] sm:$0xf0] %vm2135, %v2133
    %v2137 = vsel %vm2130, %v2106, %v2098
    %v2138 = vsel %vm2107, %v2112, %v2109
    %2139 = vrot.lane.b32.xlu0 %v2137, 96
    %v2140 = vpop.permute.xlu0 %2139
    %2141 = vrot.lane.b32.xlu0 %v2138, 96
    %v2142 = vpop.permute.xlu0 %2141
    %vm2145 = vcmask 1048326
    %2146 = vst.msk [vmem:[#allocation4 - $0x6] sm:$0xc0] %vm2145, %v2140
    %vm2147 = vcmask 1042176
    %2148 = vst.msk [vmem:[#allocation4 + $0x2] sm:$0x3] %vm2147, %v2142
    %v2149 = vld [vmem:[#allocation4] sm:$0xf]
    %v2150 = vpack.c.bf16 %v2149, %v2149
    %v2151 = vld [vmem:[%s9] sm:$0xf]
    %v2152 = vld [vmem:[%s9 + $0x4] sm:$0xf]
    %v2153 = vld [vmem:[%s9 + $0x8] sm:$0xf]
    %v2154 = vld [vmem:[%s9 + $0xc] sm:$0xf]
    %v2155 = vld [vmem:[%s9 + $0x10] sm:$0xf]
    %v2156 = vld [vmem:[%s9 + $0x14] sm:$0xf]
    %v2157 = vld [vmem:[%s9 + $0x18] sm:$0xf]
    %v2158 = vld [vmem:[%s9 + $0x1c] sm:$0xf]
    %v2159 = vld [vmem:[%s9 + $0x20] sm:$0xf]
    %v2160 = vld [vmem:[%s9 + $0x24] sm:$0xf]
    %v2161 = vld [vmem:[%s9 + $0x28] sm:$0xf]
    %v2162 = vld [vmem:[%s9 + $0x2c] sm:$0xf]
    %v2163 = vld [vmem:[%s9 + $0x30] sm:$0xf]
    %v2164 = vld [vmem:[%s9 + $0x34] sm:$0xf]
    %v2165 = vld [vmem:[%s9 + $0x38] sm:$0xf]
    %v2166 = vld [vmem:[%s9 + $0x3c] sm:$0xf]
    %v2183 = vunpack.c.l.b16 %v2151
    %v2184 = vunpack.c.l.b16 %v2152
    %v2185 = vunpack.c.l.b16 %v2153
    %v2186 = vunpack.c.l.b16 %v2154
    %v2187 = vunpack.c.l.b16 %v2155
    %v2188 = vunpack.c.l.b16 %v2156
    %v2189 = vunpack.c.l.b16 %v2157
    %v2190 = vunpack.c.l.b16 %v2158
    %v2191 = vunpack.c.l.b16 %v2159
    %v2192 = vunpack.c.l.b16 %v2160
    %v2193 = vunpack.c.l.b16 %v2161
    %v2194 = vunpack.c.l.b16 %v2162
    %v2195 = vunpack.c.l.b16 %v2163
    %v2196 = vunpack.c.l.b16 %v2164
    %v2197 = vunpack.c.l.b16 %v2165
    %v2198 = vunpack.c.l.b16 %v2166
    %v2199 = vpack.c.b16 %v2184, %v2183
    %v2200 = vpack.c.b16 %v2186, %v2185
    %v2201 = vpack.c.b16 %v2188, %v2187
    %v2202 = vpack.c.b16 %v2190, %v2189
    %v2203 = vpack.c.b16 %v2192, %v2191
    %v2204 = vpack.c.b16 %v2194, %v2193
    %v2205 = vpack.c.b16 %v2196, %v2195
    %v2206 = vpack.c.b16 %v2198, %v2197
    %2215 = vmatpush.bf16.msra.mxu0 %v2206
    %2216 = vmatpush.bf16.msra.mxu0 %v2205
    %2217 = vmatpush.bf16.msra.mxu0 %v2204
    %2218 = vmatpush.bf16.msra.mxu0 %v2203
    %2219 = vmatpush.bf16.msra.mxu0 %v2202
    %2220 = vmatpush.bf16.msra.mxu0 %v2201
    %2221 = vmatpush.bf16.msra.mxu0 %v2200
    %2222 = vmatpush.bf16.msra.mxu0 %v2199
    %2223 = vmatmul.bf16.gmra.mxu0 %v2150
    %v2224 = vpop.f32.mrf.mxu0
    %v2225 = vadd.f32 0.0, %v2224
    %v2226 = vpop.f32.mrf.mxu0
    %2227 = vdwg.mxu0
    %vm2228 = vcmask 519168
    %v2229 = vsel %vm2228, %v2225, 0.0
    %v2230 = vrot.slane %v2229, 4
    %v2231 = vadd.f32 %v2229, %v2230
    %v2232 = vrot.slane %v2231, 2
    %v2233 = vadd.f32 %v2231, %v2232
    %v2234 = vrot.slane %v2233, 1
    %v2235 = vadd.f32 %v2233, %v2234
    %v2236 = vmul.f32 %v2235, 0.25
    %v2237 = vmul.f32 %v2225, %v2225
    %v2238 = vsel %vm2228, %v2237, 0.0
    %v2239 = vrot.slane %v2238, 4
    %v2240 = vadd.f32 %v2238, %v2239
    %v2241 = vrot.slane %v2240, 2
    %v2242 = vadd.f32 %v2240, %v2241
    %v2243 = vrot.slane %v2242, 1
    %v2244 = vadd.f32 %v2242, %v2243
    %v2245 = vmul.f32 %v2244, 0.25
    %v2246 = vmul.f32 %v2236, %v2236
    %v2247 = vsub.f32 %v2245, %v2246
    %v2248 = vld [vmem:[%s10] sm:$0x1]
    %v2249 = vsub.f32 %v2225, %v2236
    %v2250 = vperm.slane %v2248, 0
    %v2251 = vmul.f32 %v2250, %v2249
    %v2252 = vadd.f32 %v2247, 1e-05
    %v2253 = vrsqrt.pop %v2252
    %v2254 = vmul.f32 %v2253, %v2252
    %v2255 = vmul.f32 %v2254, %v2253
    %v2256 = vmul.f32 0.5, %v2255
    %v2257 = vsub.f32 1.5, %v2256
    %v2258 = vmul.f32 %v2253, %v2257
    %vm2259 = vweird.f32 %v2252
    %vm2260 = vweird.f32 %v2253
    %vm2261 = vmor %vm2259, %vm2260
    %v2262 = vsel %vm2261, %v2253, %v2258
    %v2263 = vmul.f32 %v2251, %v2262
    %v2264 = vld [vmem:[%s10 + $0x1] sm:$0x1]
    %v2265 = vperm.slane %v2264, 0
    %v2266 = vadd.f32 %v2263, %v2265
    %v2267 = vmax.f32 %v2266, 0.0
    %v2268 = vpack.c.bf16 %v2267, %v2267
    %v2269 = vld [vmem:[%s11] sm:$0xf]
    %v2270 = vld [vmem:[%s11 + $0x4] sm:$0xf]
    %v2271 = vld [vmem:[%s11 + $0x8] sm:$0xf]
    %v2272 = vld [vmem:[%s11 + $0xc] sm:$0xf]
    %v2273 = vld [vmem:[%s11 + $0x10] sm:$0xf]
    %v2274 = vld [vmem:[%s11 + $0x14] sm:$0xf]
    %v2275 = vld [vmem:[%s11 + $0x18] sm:$0xf]
    %v2276 = vld [vmem:[%s11 + $0x1c] sm:$0xf]
    %v2285 = vunpack.c.l.b16 %v2269
    %v2286 = vunpack.c.l.b16 %v2270
    %v2287 = vunpack.c.l.b16 %v2271
    %v2288 = vunpack.c.l.b16 %v2272
    %v2289 = vunpack.c.l.b16 %v2273
    %v2290 = vunpack.c.l.b16 %v2274
    %v2291 = vunpack.c.l.b16 %v2275
    %v2292 = vunpack.c.l.b16 %v2276
    %v2293 = vpack.c.b16 %v2286, %v2285
    %v2294 = vpack.c.b16 %v2288, %v2287
    %v2295 = vpack.c.b16 %v2290, %v2289
    %v2296 = vpack.c.b16 %v2292, %v2291
    %vm2301 = vcmask 523264
    %v2303 = vsel %vm2301, %v2268, 0
    %2305 = vmatpush.bf16.msra.mxu0 0
    %2306 = vmatpush.bf16.msra.mxu0 0
    %2307 = vmatpush.bf16.msra.mxu0 0
    %2308 = vmatpush.bf16.msra.mxu0 0
    %2309 = vmatpush.bf16.msra.mxu0 %v2296
    %2310 = vmatpush.bf16.msra.mxu0 %v2295
    %2311 = vmatpush.bf16.msra.mxu0 %v2294
    %2312 = vmatpush.bf16.msra.mxu0 %v2293
    %2313 = vmatmul.bf16.gmra.mxu0 %v2303
    %v2314 = vpop.f32.mrf.mxu0
    %v2315 = vadd.f32 0.0, %v2314
    %v2316 = vpop.f32.mrf.mxu0
    %2317 = vdwg.mxu0
    %v2318 = vsel %vm1128, %v2315, 0.0
    %v2319 = vrot.slane %v2318, 4
    %v2320 = vadd.f32 %v2318, %v2319
    %v2321 = vrot.slane %v2320, 2
    %v2322 = vadd.f32 %v2320, %v2321
    %v2323 = vrot.slane %v2322, 1
    %v2324 = vadd.f32 %v2322, %v2323
    %v2325 = vmul.f32 %v2324, 0.25
    %v2326 = vmul.f32 %v2315, %v2315
    %v2327 = vsel %vm1128, %v2326, 0.0
    %v2328 = vrot.slane %v2327, 4
    %v2329 = vadd.f32 %v2327, %v2328
    %v2330 = vrot.slane %v2329, 2
    %v2331 = vadd.f32 %v2329, %v2330
    %v2332 = vrot.slane %v2331, 1
    %v2333 = vadd.f32 %v2331, %v2332
    %v2334 = vmul.f32 %v2333, 0.25
    %v2335 = vmul.f32 %v2325, %v2325
    %v2336 = vsub.f32 %v2334, %v2335
    %v2337 = vld [vmem:[%s12] sm:$0x1]
    %v2338 = vsub.f32 %v2315, %v2325
    %v2339 = vperm.slane %v2337, 0
    %v2340 = vmul.f32 %v2339, %v2338
    %v2341 = vadd.f32 %v2336, 1e-05
    %v2342 = vrsqrt.pop %v2341
    %v2343 = vmul.f32 %v2342, %v2341
    %v2344 = vmul.f32 %v2343, %v2342
    %v2345 = vmul.f32 0.5, %v2344
    %v2346 = vsub.f32 1.5, %v2345
    %v2347 = vmul.f32 %v2342, %v2346
    %vm2348 = vweird.f32 %v2341
    %vm2349 = vweird.f32 %v2342
    %vm2350 = vmor %vm2348, %vm2349
    %v2351 = vsel %vm2350, %v2342, %v2347
    %v2352 = vmul.f32 %v2340, %v2351
    %v2353 = vld [vmem:[%s12 + $0x1] sm:$0x1]
    %v2354 = vperm.slane %v2353, 0
    %v2355 = vadd.f32 %v2352, %v2354
    %v2356 = vmax.f32 %v2355, 0.0
    %v2357 = vpack.c.bf16 %v2356, %v2356
    %v2358 = vld [vmem:[%s13] sm:$0xf]
    %v2359 = vld [vmem:[%s13 + $0x4] sm:$0xf]
    %v2360 = vld [vmem:[%s13 + $0x8] sm:$0xf]
    %v2361 = vld [vmem:[%s13 + $0xc] sm:$0xf]
    %v2362 = vld [vmem:[%s14] sm:$0x1]
    %v2364 = vperm.slane %v2362, 0
    %v2370 = vunpack.c.l.b16 %v2358
    %v2371 = vunpack.c.l.b16 %v2359
    %v2372 = vunpack.c.l.b16 %v2360
    %v2373 = vunpack.c.l.b16 %v2361
    %v2374 = vpack.c.b16 %v2371, %v2370
    %v2375 = vpack.c.b16 %v2373, %v2372
    %v2379 = vsel %vm1126, %v2357, 0
    %2381 = vmatpush.bf16.msra.mxu0 0
    %2382 = vmatpush.bf16.msra.mxu0 0
    %2383 = vmatpush.bf16.msra.mxu0 0
    %2384 = vmatpush.bf16.msra.mxu0 0
    %2385 = vmatpush.bf16.msra.mxu0 0
    %2386 = vmatpush.bf16.msra.mxu0 0
    %2387 = vmatpush.bf16.msra.mxu0 %v2375
    %2388 = vmatpush.bf16.msra.mxu0 %v2374
    %2389 = vmatmul.bf16.gmra.mxu0 %v2379
    %v2390 = vpop.f32.mrf.mxu0
    %v2391 = vadd.f32 %v2364, %v2390
    %v2392 = vpop.f32.mrf.mxu0
    %2393 = vdwg.mxu0
    %2394 = vst [vmem:[#allocation5] sm:$0xf] %v2391
    // Predicated region
    $region62: #{lora_cnn_forward.1} parent=1 // pred_check
      _
    $region63: #{lora_cnn_forward.1} parent=1 // pred_check_branch
      %2396 = sbr.rel (0) target = $region65
    $region64: #{lora_cnn_forward.1} parent=1 // pred_region
      %2398 = vsyncadd [#allocation6], 0
      %s2400 = sshll.u32 [#allocation5], 4
      %s2401 = int_to_ptr.vmem [resolvable:$true] %s2400
      %s2402 = sshll.u32 %s15, 4
      %s2403 = int_to_ptr.hbm [resolvable:$true] %s2402
      %2405 = dma.vmem_to_hbm [thread:$0]  %s2401, 64, %s2403, [#allocation6]
    $region65: #{lora_cnn_forward.1} parent=1 // pred_fallthru
      _
    // Predicated region
    $region66: #{lora_cnn_forward.1} parent=1 // pred_check
      _
    $region67: #{lora_cnn_forward.1} parent=1 // pred_check_branch
      %2407 = sbr.rel (0) target = $region69
    $region68: #{lora_cnn_forward.1} parent=1 // pred_region
      %2409 = dma.done [#allocation6], 64
    $region69: #{lora_cnn_forward.1} parent=1 // pred_fallthru
      _
    %2410 = vsyncpa [#allocation6], 1

</llo_original>
